<compile_context>
chip_gen: v6e
topology: v6e:2x2x1
jax: 0.10.0
libtpu: 0.0.40
codegen_flags: <defaults>
</compile_context>

<pallas_src>
import functools

import jax
import jax.numpy as jnp
from jax import lax
from jax.experimental import pallas as pl
from jax.experimental.pallas import tpu as pltpu


def _round_up(x, m):
    return (x + m - 1) // m * m


def gat_kernel(h_ref, adj_ref, w_ext_ref, a2_ref, o_ref,
               wh_scr, wh1_scr, wh2_scr, *, alpha, concat, f_out_pad, tile_q):
    """One row-tile of query nodes per grid step; Wh for ALL nodes lives in VMEM scratch."""
    i = pl.program_id(0)

    # ---- Stage 0 (first tile only): one fused bf16 MXU matmul for all nodes. ----
    # wh_ext = h @ [ W | 0 | W@a1 | 0 ]  ->  [ Wh | 0 | Wh@a1 | 0 ]
    @pl.when(i == 0)
    def _():
        wh_ext = jnp.dot(h_ref[...], w_ext_ref[...],
                         preferred_element_type=jnp.float32)            # (N_pad, F_ext) f32
        wh = wh_ext[:, :f_out_pad]                                       # (N_pad, F_out_pad)
        wh_scr[...] = wh.astype(jnp.bfloat16)                            # values for att @ Wh
        wh1_scr[...] = wh_ext[:, f_out_pad:f_out_pad + 1]                # (N_pad, 1) = Wh @ a1
        # (Wh @ a2)^T obtained directly as a (1, N_pad) row via contraction
        # (avoids an XLU transpose of a column vector).
        wh2_scr[...] = lax.dot_general(
            a2_ref[...], wh, (((0,), (1,)), ((), ())),
            preferred_element_type=jnp.float32)

    # ---- Attention logits for this row tile: e[q, j] = LeakyReLU(Wh1[q] + Wh2[j]). ----
    row0 = pl.multiple_of(i * tile_q, tile_q)
    wh1_q = wh1_scr[pl.ds(row0, tile_q), :]                              # (tile_q, 1)
    e = wh1_q + wh2_scr[...]                                             # (tile_q, N_pad)
    e = jnp.where(e > 0, e, alpha * e)                                   # LeakyReLU(alpha)

    # Mask non-edges (int8 adjacency; zero-padded rows/cols are masked out too).
    att = jnp.where(adj_ref[...].astype(jnp.float32) > 0, e, jnp.float32(-9.0e15))

    # Softmax over dim=1, kept in f32; EUP reciprocal instead of a VALU divide.
    m = jnp.max(att, axis=1, keepdims=True)
    p = jnp.exp(att - m)
    att = p * pl.reciprocal(jnp.sum(p, axis=1, keepdims=True), approx=True)

    # F.dropout(attention, ..., training=False) -> identity (inference kernel).

    # attention @ Wh on the MXU: bf16 operands, f32 accumulation.
    h_prime = jnp.dot(att.astype(jnp.bfloat16), wh_scr[...],
                      preferred_element_type=jnp.float32)                # (tile_q, F_out_pad)

    if concat:
        # ELU(x) = x if x > 0 else exp(x) - 1
        h_prime = jnp.where(h_prime > 0, h_prime, jnp.exp(h_prime) - 1.0)

    o_ref[...] = h_prime.astype(o_ref.dtype)                             # lane-dense store


def gat_forward(h, adj, W, a, *, alpha=0.2, concat=True, tile_q=128):
    """GAT layer forward (eval mode). Pads everything to TPU-friendly 128-multiples."""
    N, f_in = h.shape
    f_out = W.shape[1]
    assert tile_q % 128 == 0

    n_pad = _round_up(N, tile_q)
    f_in_pad = _round_up(f_in, 128)
    f_out_pad = _round_up(f_out, 128)
    f_ext = f_out_pad + 128                       # [ W | pad | W@a1 | pad ]

    a1 = a[:f_out, :]
    a2 = a[f_out:, :]

    # Extended weight: fold the a1 projection into the main matmul (bf16 MXU operand).
    w_ext = jnp.zeros((f_in_pad, f_ext), jnp.float32)
    w_ext = w_ext.at[:f_in, :f_out].set(W)
    w_ext = w_ext.at[:f_in, f_out_pad:f_out_pad + 1].set(W @ a1)
    w_ext = w_ext.astype(jnp.bfloat16)

    a2_pad = jnp.zeros((f_out_pad, 1), jnp.float32).at[:f_out, :].set(a2)

    h_pad = jnp.zeros((n_pad, f_in_pad), jnp.bfloat16)
    h_pad = h_pad.at[:N, :f_in].set(h.astype(jnp.bfloat16))

    # int8 adjacency mask: 4x less HBM/VMEM traffic than f32 for the O(N^2) tensor.
    adj_i8 = jnp.zeros((n_pad, n_pad), jnp.int8)
    adj_i8 = adj_i8.at[:N, :N].set((adj > 0).astype(jnp.int8))

    grid = (n_pad // tile_q,)
    kernel = functools.partial(gat_kernel, alpha=float(alpha), concat=concat,
                               f_out_pad=f_out_pad, tile_q=tile_q)

    cost = pl.CostEstimate(
        flops=2 * n_pad * f_in_pad * f_ext            # h @ W_ext
        + 2 * n_pad * f_out_pad                       # a2 contraction
        + 2 * n_pad * n_pad * f_out_pad,              # att @ Wh
        transcendentals=n_pad * n_pad + n_pad * f_out_pad,
        bytes_accessed=n_pad * f_in_pad * 2 + n_pad * n_pad * 1
        + f_in_pad * f_ext * 2 + f_out_pad * 4 + n_pad * f_out_pad * 4,
    )

    out_pad = pl.pallas_call(
        kernel,
        out_shape=jax.ShapeDtypeStruct((n_pad, f_out_pad), jnp.float32),
        grid=grid,
        in_specs=[
            pl.BlockSpec((n_pad, f_in_pad), lambda i: (0, 0)),   # h (all nodes, resident)
            pl.BlockSpec((tile_q, n_pad), lambda i: (i, 0)),     # adj row tile (streamed)
            pl.BlockSpec((f_in_pad, f_ext), lambda i: (0, 0)),   # W_ext (resident)
            pl.BlockSpec((f_out_pad, 1), lambda i: (0, 0)),      # a2 column (resident)
        ],
        out_specs=pl.BlockSpec((tile_q, f_out_pad), lambda i: (i, 0)),
        scratch_shapes=[
            pltpu.VMEM((n_pad, f_out_pad), jnp.bfloat16),        # Wh (all nodes), bf16
            pltpu.VMEM((n_pad, 1), jnp.float32),                 # Wh @ a1 (column)
            pltpu.VMEM((1, n_pad), jnp.float32),                 # (Wh @ a2)^T (row)
        ],
        compiler_params=pltpu.CompilerParams(
            # Row tiles after the first read the Wh scratch filled at i == 0, so the
            # grid axis is sequential.  (For multi-core v7x, recompute Wh per tile
            # instead and mark this axis "parallel".)
            dimension_semantics=("arbitrary",),
        ),
        cost_estimate=cost,
    )(h_pad, adj_i8, w_ext, a2_pad)

    return out_pad[:N, :f_out]


def gat_reference(h, adj, W, a, *, alpha=0.2, concat=True):
    """Plain-JAX f32 reference mirroring the PyTorch forward (eval mode)."""
    f_out = W.shape[1]
    Wh = h @ W
    Wh1 = Wh @ a[:f_out, :]
    Wh2 = Wh @ a[f_out:, :]
    e = Wh1 + Wh2.T
    e = jnp.where(e > 0, e, alpha * e)
    att = jnp.where(adj > 0, e, -9.0e15)
    att = jax.nn.softmax(att, axis=1)
    h_prime = att @ Wh
    return jax.nn.elu(h_prime) if concat else h_prime


def xavier_uniform(key, shape, gain):
    fan_in, fan_out = shape
    limit = gain * (6.0 / (fan_in + fan_out)) ** 0.5
    return jax.random.uniform(key, shape, jnp.float32, -limit, limit)


if __name__ == "__main__":
    N, F_IN, F_OUT = 200, 32, 16
    ALPHA = 0.2        # LeakyReLU negative slope
    DROPOUT = 0.1      # unused at inference (identity)
    CONCAT = True

    key = jax.random.PRNGKey(0)
    k_h, k_adj, k_w, k_a = jax.random.split(key, 4)

    # Xavier-uniform init (gain=1.414, as in the module).  Features/weights are
    # snapped to bf16-representable values since the kernel feeds the MXU in bf16.
    W = xavier_uniform(k_w, (F_IN, F_OUT), gain=1.414)
    W = W.astype(jnp.bfloat16).astype(jnp.float32)
    a = xavier_uniform(k_a, (2 * F_OUT, 1), gain=1.414)

    h = jax.random.normal(k_h, (N, F_IN), jnp.float32)
    h = h.astype(jnp.bfloat16).astype(jnp.float32)
    adj = (jax.random.uniform(k_adj, (N, N)) < 0.3).astype(jnp.float32)
    adj = jnp.maximum(adj, jnp.eye(N, dtype=jnp.float32))   # self-loops

    out = gat_forward(h, adj, W, a, alpha=ALPHA, concat=CONCAT)
    out = jax.block_until_ready(out)

    ref = gat_reference(h, adj, W, a, alpha=ALPHA, concat=CONCAT)
    assert out.shape == (N, F_OUT)
    # bf16 MXU operands + approximate EUP reciprocal -> looser tolerance than pure f32.
    assert jnp.allclose(out, ref, atol=5e-2, rtol=5e-2), "mismatch vs reference"

    print("KERNEL_OK")
</pallas_src>

<mosaic_0001>
module attributes {stable_mosaic.version = 11 : i64} {
  func.func @gat_kernel(%arg0: i32, %arg1: memref<256x128xbf16, #tpu.memory_space<vmem>>, %arg2: memref<128x256xi8, #tpu.memory_space<vmem>>, %arg3: memref<128x256xbf16, #tpu.memory_space<vmem>>, %arg4: memref<128x1xf32, #tpu.memory_space<vmem>>, %arg5: memref<128x128xf32, #tpu.memory_space<vmem>>, %arg6: memref<256x128xbf16, #tpu.memory_space<vmem>>, %arg7: memref<256x1xf32, #tpu.memory_space<vmem>>, %arg8: memref<1x256xf32, #tpu.memory_space<vmem>>) attributes {dimension_semantics = [#tpu.dimension_semantics<arbitrary>], iteration_bounds = array<i64: 2>, scalar_prefetch = 0 : i64, scratch_operands = 3 : i64, tpu.core_type = #tpu.core_type<tc>, window_params = [{pipeline_mode = #tpu.pipeline_mode<synchronous>, transform_indices = @transform_0, window_bounds = array<i64: 256, 128>}, {transform_indices = @transform_1, window_bounds = array<i64: 128, 256>}, {pipeline_mode = #tpu.pipeline_mode<synchronous>, transform_indices = @transform_2, window_bounds = array<i64: 128, 256>}, {pipeline_mode = #tpu.pipeline_mode<synchronous>, transform_indices = @transform_3, window_bounds = array<i64: 128, 1>}, {transform_indices = @transform_4, window_bounds = array<i64: 128, 128>}]} {
    %c0_i32 = arith.constant 0 : i32
    %0 = arith.cmpi eq, %arg0, %c0_i32 : i32
    %1 = arith.extui %0 : i1 to i32
    %c0_i32_0 = arith.constant 0 : i32
    %2 = arith.cmpi ne, %1, %c0_i32_0 : i32
    scf.if %2 {
      %c0_17 = arith.constant 0 : index
      %c0_18 = arith.constant 0 : index
      %42 = vector.load %arg1[%c0_17, %c0_18] : memref<256x128xbf16, #tpu.memory_space<vmem>>, vector<256x128xbf16>
      %c0_19 = arith.constant 0 : index
      %c0_20 = arith.constant 0 : index
      %43 = vector.load %arg3[%c0_19, %c0_20] : memref<128x256xbf16, #tpu.memory_space<vmem>>, vector<128x256xbf16>
      %cst_21 = arith.constant dense<0.000000e+00> : vector<256x256xf32>
      %44 = tpu.matmul %42, %43, %cst_21 {dimension_numbers = #tpu.dot_dimension_numbers<[1], [0], [0], [1], [0, 0, 1, 1], [], []>} : vector<256x128xbf16>, vector<128x256xbf16>, vector<256x256xf32> -> vector<256x256xf32>
      %45 = vector.extract_strided_slice %44 {offsets = [0, 0], sizes = [256, 128], strides = [1, 1]} : vector<256x256xf32> to vector<256x128xf32>
      %46 = arith.truncf %45 : vector<256x128xf32> to vector<256x128xbf16>
      %c0_22 = arith.constant 0 : index
      %c0_23 = arith.constant 0 : index
      %47 = vector.load %arg6[%c0_22, %c0_23] : memref<256x128xbf16, #tpu.memory_space<vmem>>, vector<256x128xbf16>
      tpu.vector_store %arg6[%c0_22, %c0_23], %46 {strides = array<i32>} : memref<256x128xbf16, #tpu.memory_space<vmem>>, vector<256x128xbf16>,
      %48 = vector.extract_strided_slice %44 {offsets = [0, 128], sizes = [256, 1], strides = [1, 1]} : vector<256x256xf32> to vector<256x1xf32>
      %c0_24 = arith.constant 0 : index
      %c0_25 = arith.constant 0 : index
      %49 = vector.load %arg7[%c0_24, %c0_25] : memref<256x1xf32, #tpu.memory_space<vmem>>, vector<256x1xf32>
      tpu.vector_store %arg7[%c0_24, %c0_25], %48 {strides = array<i32>} : memref<256x1xf32, #tpu.memory_space<vmem>>, vector<256x1xf32>,
      %c0_26 = arith.constant 0 : index
      %c0_27 = arith.constant 0 : index
      %50 = vector.load %arg4[%c0_26, %c0_27] : memref<128x1xf32, #tpu.memory_space<vmem>>, vector<128x1xf32>
      %cst_28 = arith.constant dense<0.000000e+00> : vector<1x256xf32>
      %51 = tpu.matmul %50, %45, %cst_28 {dimension_numbers = #tpu.dot_dimension_numbers<[0], [1], [1], [0], [0, 1, 1, 0], [], []>} : vector<128x1xf32>, vector<256x128xf32>, vector<1x256xf32> -> vector<1x256xf32>
      %c0_29 = arith.constant 0 : index
      %c0_30 = arith.constant 0 : index
      %52 = vector.load %arg8[%c0_29, %c0_30] : memref<1x256xf32, #tpu.memory_space<vmem>>, vector<1x256xf32>
      tpu.vector_store %arg8[%c0_29, %c0_30], %51 {strides = array<i32>} : memref<1x256xf32, #tpu.memory_space<vmem>>, vector<1x256xf32>,
    } else {
    }
    %c128_i32 = arith.constant 128 : i32
    %3 = arith.muli %arg0, %c128_i32 : i32
    %4 = tpu.assume_multiple %3, 128 : i32
    %5 = arith.index_cast %4 : i32 to index
    %c0 = arith.constant 0 : index
    %6 = vector.load %arg7[%5, %c0] : memref<256x1xf32, #tpu.memory_space<vmem>>, vector<128x1xf32>
    %c0_1 = arith.constant 0 : index
    %c0_2 = arith.constant 0 : index
    %7 = vector.load %arg8[%c0_1, %c0_2] : memref<1x256xf32, #tpu.memory_space<vmem>>, vector<1x256xf32>
    %8 = vector.broadcast %6 : vector<128x1xf32> to vector<128x256xf32>
    %9 = vector.broadcast %7 : vector<1x256xf32> to vector<128x256xf32>
    %10 = arith.addf %8, %9 : vector<128x256xf32>
    %cst = arith.constant 0.000000e+00 : f32
    %11 = vector.broadcast %cst : f32 to vector<128x256xf32>
    %12 = arith.cmpf ogt, %10, %11 : vector<128x256xf32>
    %cst_3 = arith.constant 2.000000e-01 : f32
    %13 = vector.broadcast %cst_3 : f32 to vector<128x256xf32>
    %14 = arith.mulf %13, %10 : vector<128x256xf32>
    %15 = arith.select %12, %10, %14 : vector<128x256xi1>, vector<128x256xf32>
    %c0_4 = arith.constant 0 : index
    %c0_5 = arith.constant 0 : index
    %16 = vector.load %arg2[%c0_4, %c0_5] : memref<128x256xi8, #tpu.memory_space<vmem>>, vector<128x256xi8>
    %17 = arith.sitofp %16 : vector<128x256xi8> to vector<128x256xf32>
    %cst_6 = arith.constant 0.000000e+00 : f32
    %18 = vector.broadcast %cst_6 : f32 to vector<128x256xf32>
    %19 = arith.cmpf ogt, %17, %18 : vector<128x256xf32>
    %cst_7 = arith.constant -9.000000e+15 : f32
    %20 = vector.broadcast %cst_7 : f32 to vector<128x256xf32>
    %21 = arith.select %19, %15, %20 : vector<128x256xi1>, vector<128x256xf32>
    %cst_8 = arith.constant dense<0xFF800000> : vector<128xf32>
    %22 = vector.multi_reduction <maximumf>, %21, %cst_8 [1] : vector<128x256xf32> to vector<128xf32>
    %23 = vector.shape_cast %22 : vector<128xf32> to vector<128x1xf32>
    %24 = vector.broadcast %23 : vector<128x1xf32> to vector<128x256xf32>
    %25 = arith.subf %21, %24 : vector<128x256xf32>
    %26 = math.exp %25 : vector<128x256xf32>
    %cst_9 = arith.constant dense<0.000000e+00> : vector<128xf32>
    %27 = vector.multi_reduction <add>, %26, %cst_9 [1] : vector<128x256xf32> to vector<128xf32>
    %28 = vector.shape_cast %27 : vector<128xf32> to vector<128x1xf32>
    %29 = tpu.reciprocal %28 {approx = true} : vector<128x1xf32> -> vector<128x1xf32>
    %30 = vector.broadcast %29 : vector<128x1xf32> to vector<128x256xf32>
    %31 = arith.mulf %26, %30 : vector<128x256xf32>
    %32 = arith.truncf %31 : vector<128x256xf32> to vector<128x256xbf16>
    %c0_10 = arith.constant 0 : index
    %c0_11 = arith.constant 0 : index
    %33 = vector.load %arg6[%c0_10, %c0_11] : memref<256x128xbf16, #tpu.memory_space<vmem>>, vector<256x128xbf16>
    %cst_12 = arith.constant dense<0.000000e+00> : vector<128x128xf32>
    %34 = tpu.matmul %32, %33, %cst_12 {dimension_numbers = #tpu.dot_dimension_numbers<[1], [0], [0], [1], [0, 0, 1, 1], [], []>} : vector<128x256xbf16>, vector<256x128xbf16>, vector<128x128xf32> -> vector<128x128xf32>
    %cst_13 = arith.constant 0.000000e+00 : f32
    %35 = vector.broadcast %cst_13 : f32 to vector<128x128xf32>
    %36 = arith.cmpf ogt, %34, %35 : vector<128x128xf32>
    %37 = math.exp %34 : vector<128x128xf32>
    %cst_14 = arith.constant 1.000000e+00 : f32
    %38 = vector.broadcast %cst_14 : f32 to vector<128x128xf32>
    %39 = arith.subf %37, %38 : vector<128x128xf32>
    %40 = arith.select %36, %34, %39 : vector<128x128xi1>, vector<128x128xf32>
    %c0_15 = arith.constant 0 : index
    %c0_16 = arith.constant 0 : index
    %41 = vector.load %arg5[%c0_15, %c0_16] : memref<128x128xf32, #tpu.memory_space<vmem>>, vector<128x128xf32>
    tpu.vector_store %arg5[%c0_15, %c0_16], %40 {strides = array<i32>} : memref<128x128xf32, #tpu.memory_space<vmem>>, vector<128x128xf32>,
    return
  }
  func.func @transform_0(%arg0: i32) -> (i32, i32) {
    %c0_i32 = arith.constant 0 : i32
    %c0_i32_0 = arith.constant 0 : i32
    %c0_i32_1 = arith.constant 0 : i32
    return %c0_i32, %c0_i32_0 : i32, i32
  }
  func.func @transform_1(%arg0: i32) -> (i32, i32) {
    %c0_i32 = arith.constant 0 : i32
    %c0_i32_0 = arith.constant 0 : i32
    return %arg0, %c0_i32 : i32, i32
  }
  func.func @transform_2(%arg0: i32) -> (i32, i32) {
    %c0_i32 = arith.constant 0 : i32
    %c0_i32_0 = arith.constant 0 : i32
    %c0_i32_1 = arith.constant 0 : i32
    return %c0_i32, %c0_i32_0 : i32, i32
  }
  func.func @transform_3(%arg0: i32) -> (i32, i32) {
    %c0_i32 = arith.constant 0 : i32
    %c0_i32_0 = arith.constant 0 : i32
    %c0_i32_1 = arith.constant 0 : i32
    return %c0_i32, %c0_i32_0 : i32, i32
  }
  func.func @transform_4(%arg0: i32) -> (i32, i32) {
    %c0_i32 = arith.constant 0 : i32
    %c0_i32_0 = arith.constant 0 : i32
    return %arg0, %c0_i32 : i32, i32
  }
}

</mosaic_0001>

<llo_original>
// kernel: tpu_custom_call.1
$region0: #{tpu_custom_call.1}
  #allocation0 [shape = 'u32[]', space=smem, size = 0x4, offset = 0x4, fixed_abs, tag = 'smem constant byte address 0x4 - core index']
  #allocation1 [shape = 'u32[144,128]{1,0:T(1,128)}', space=vmem, size = 0x12000, scoped, tag = 'internal scratch']
  #allocation2 [shape = 'bf16[256,128]{1,0:T(8,128)(2,1)}', space=vmem, size = 0x10000, scoped, tag = 'scratch operand']
  #allocation3 [shape = 'f32[256,1]{1,0:T(8,128)}', space=vmem, size = 0x20000, scoped, tag = 'scratch operand']
  #allocation4 [shape = 'f32[1,256]{1,0:T(1,128)}', space=vmem, size = 0x400, scoped, tag = 'scratch operand']
  %s0 = inlined_call_operand.vmem [shape: bf16[256,128], index: 0, kind: input, shape index: {}]
  %s1 = inlined_call_operand.hbm [shape: s8[256,256], index: 1, kind: input, shape index: {}]
  %s2 = inlined_call_operand.hbm [shape: bf16[128,256], index: 2, kind: input, shape index: {}]
  %s3 = inlined_call_operand.vmem [shape: f32[128,1], index: 3, kind: input, shape index: {}]
  %s4 = inlined_call_operand.hbm [shape: f32[256,128], index: 4, kind: output, shape index: {}]
  %s5 = sld [smem:[#allocation0]]
  $region61: #{tpu_custom_call.1} parent=0
    _
  %s7 = ssub.s32 1, %s5
  %s8 = scalar_select 0, %s7, %s5
  $region1: #{tpu_custom_call.1} parent=0
    #allocation5 [shape = 'u8[65536]{0}', space=vmem, size = 0x10000, scoped, tag = 'input window, operand 1']
    #allocation6 [shape = 's32[2]{0}', space=sflag, size = 0x8, scoped, tag = 'scoped memory for tpu_custom_call.1']
    #allocation7 [shape = 's32[2]{0}', space=sflag, size = 0x8, scoped, tag = 'scoped memory for tpu_custom_call.1']
    #allocation8 [shape = 'u8[65536]{0}', space=vmem, size = 0x10000, scoped, tag = 'input window, operand 2, single buffered']
    #allocation9 [shape = 's32[1]{0}', space=sflag, size = 0x4, scoped, tag = 'scoped memory for tpu_custom_call.1']
    #allocation10 [shape = 'u8[131072]{0}', space=vmem, size = 0x20000, scoped, tag = 'output window, operand 0']
    %9 = vsyncpa [#allocation6], 0
    %s10 = scalar_lea.sflag [#allocation6], 1
    %11 = vsyncpa %s10, 0
    %12 = vsyncpa [#allocation9], 0
    %13 = vsyncpa [#allocation7], 0
    %s14 = scalar_lea.sflag [#allocation7], 1
    %15 = vsyncpa %s14, 0
    loop: start=0, step=1, limit=4
    $region2: #{tpu_custom_call.1} parent=1 // loop_pre_header
      _
    $region3: #{tpu_custom_call.1} parent=1 // loop_header
      %s17 = sphi 0, %s21
      %p18 = scmp.ge.s32.totalorder %s17, 4
      %s25 = sphi 0, %s25
      %s27 = sphi 0, %s25
      %s28 = sphi 0, %s27
      %s42 = sphi 0, %s28
      %s48 = sphi 0, %s50
      %s51 = sphi 0, %s48
      %s52 = sphi 0, %s51
      %s68 = sphi 0, %s52
      %s72 = sphi 0, %s72
      %s74 = sphi 0, %s72
      %s75 = sphi 0, %s74
      %s89 = sphi 0, %s75
      %s93 = sphi 0, %s93
      %s95 = sphi 0, %s93
      %s96 = sphi 0, %s95
      %s110 = sphi 0, %s96
      %s116 = sphi 0, %s118
      %s119 = sphi 0, %s116
      %s120 = sphi 0, %s119
      %s136 = sphi 0, %s120
    $region4: #{tpu_custom_call.1} parent=1 // loop_header_branch
      %20 = sbr.rel (%p18) target = $region8
    $region5: #{tpu_custom_call.1} parent=1 // loop_body
      %s22 = ssub.s32 %s17, 1
      %s23 = ssub.s32 %s17, 2
      %s24 = sadd.s32 %s17, 1
      %s26 = sadd.s32 %s25, 1
      %p29 = scmp.eq.s32.totalorder %s17, 1
      %p30 = scmp.ne.s32.totalorder %s25, %s27
      %p31 = scmp.eq.s32.totalorder %s17, 0
      %p32 = por %p30, %p31
      %p33 = scmp.ne.s32.totalorder %s25, %s27
      %p34 = scmp.eq.s32.totalorder %s22, 1
      %p35 = por %p33, %p34
      %p36 = scmp.ne.s32.totalorder %s27, %s28
      %p37 = scmp.eq.s32.totalorder %s22, 0
      %p38 = por %p36, %p37
      %p39 = scmp.ne.s32.totalorder %s27, %s28
      %p40 = scmp.eq.s32.totalorder %s23, 1
      %p41 = por %p39, %p40
      %p43 = scmp.ne.s32.totalorder %s28, %s42
      %p44 = scmp.eq.s32.totalorder %s23, 0
      %p45 = por %p43, %p44
      %s46 = ssub.s32 %s17, %s24
      %p47 = scmp.eq.s32.totalorder %s46, 0
      %s49 = sadd.s32 %s48, 1
      %s50 = scalar_select %p47, %s48, %s49
      %p53 = pneg %p47
      %p54 = scmp.eq.s32.totalorder %s17, 1
      %p55 = por %p53, %p54
      %p56 = scmp.ne.s32.totalorder %s48, %s51
      %p57 = scmp.eq.s32.totalorder %s17, 0
      %p58 = por %p56, %p57
      %p59 = scmp.ne.s32.totalorder %s48, %s51
      %p60 = scmp.eq.s32.totalorder %s22, 1
      %p61 = por %p59, %p60
      %p62 = scmp.ne.s32.totalorder %s51, %s52
      %p63 = scmp.eq.s32.totalorder %s22, 0
      %p64 = por %p62, %p63
      %p65 = scmp.ne.s32.totalorder %s51, %s52
      %p66 = scmp.eq.s32.totalorder %s23, 1
      %p67 = por %p65, %p66
      %p69 = scmp.ne.s32.totalorder %s52, %s68
      %p70 = scmp.eq.s32.totalorder %s23, 0
      %p71 = por %p69, %p70
      %s73 = sadd.s32 %s72, 1
      %p76 = scmp.eq.s32.totalorder %s17, 1
      %p77 = scmp.ne.s32.totalorder %s72, %s74
      %p78 = scmp.eq.s32.totalorder %s17, 0
      %p79 = por %p77, %p78
      %p80 = scmp.ne.s32.totalorder %s72, %s74
      %p81 = scmp.eq.s32.totalorder %s22, 1
      %p82 = por %p80, %p81
      %p83 = scmp.ne.s32.totalorder %s74, %s75
      %p84 = scmp.eq.s32.totalorder %s22, 0
      %p85 = por %p83, %p84
      %p86 = scmp.ne.s32.totalorder %s74, %s75
      %p87 = scmp.eq.s32.totalorder %s23, 1
      %p88 = por %p86, %p87
      %p90 = scmp.ne.s32.totalorder %s75, %s89
      %p91 = scmp.eq.s32.totalorder %s23, 0
      %p92 = por %p90, %p91
      %s94 = sadd.s32 %s93, 1
      %p97 = scmp.eq.s32.totalorder %s17, 1
      %p98 = scmp.ne.s32.totalorder %s93, %s95
      %p99 = scmp.eq.s32.totalorder %s17, 0
      %p100 = por %p98, %p99
      %p101 = scmp.ne.s32.totalorder %s93, %s95
      %p102 = scmp.eq.s32.totalorder %s22, 1
      %p103 = por %p101, %p102
      %p104 = scmp.ne.s32.totalorder %s95, %s96
      %p105 = scmp.eq.s32.totalorder %s22, 0
      %p106 = por %p104, %p105
      %p107 = scmp.ne.s32.totalorder %s95, %s96
      %p108 = scmp.eq.s32.totalorder %s23, 1
      %p109 = por %p107, %p108
      %p111 = scmp.ne.s32.totalorder %s96, %s110
      %p112 = scmp.eq.s32.totalorder %s23, 0
      %p113 = por %p111, %p112
      %s114 = ssub.s32 %s17, %s24
      %p115 = scmp.eq.s32.totalorder %s114, 0
      %s117 = sadd.s32 %s116, 1
      %s118 = scalar_select %p115, %s116, %s117
      %p121 = pneg %p115
      %p122 = scmp.eq.s32.totalorder %s17, 1
      %p123 = por %p121, %p122
      %p124 = scmp.ne.s32.totalorder %s116, %s119
      %p125 = scmp.eq.s32.totalorder %s17, 0
      %p126 = por %p124, %p125
      %p127 = scmp.ne.s32.totalorder %s116, %s119
      %p128 = scmp.eq.s32.totalorder %s22, 1
      %p129 = por %p127, %p128
      %p130 = scmp.ne.s32.totalorder %s119, %s120
      %p131 = scmp.eq.s32.totalorder %s22, 0
      %p132 = por %p130, %p131
      %p133 = scmp.ne.s32.totalorder %s119, %s120
      %p134 = scmp.eq.s32.totalorder %s23, 1
      %p135 = por %p133, %p134
      %p137 = scmp.ne.s32.totalorder %s120, %s136
      %p138 = scmp.eq.s32.totalorder %s23, 0
      %p139 = por %p137, %p138
      %p140 = scmp.le.s32.totalorder 1, %s17
      %p141 = scmp.lt.s32.totalorder %s17, 3
      %p142 = pnand %p140, %p141
      %p143 = pneg %p142
      // Predicated region
      $region9: #{tpu_custom_call.1} parent=5 // pred_check
        _
      $region10: #{tpu_custom_call.1} parent=5 // pred_check_branch
        %145 = sbr.rel (%p142) target = $region12
      $region11: #{tpu_custom_call.1} parent=5 // pred_region
        %s146 = ssub.s32 %s17, 1
        // Predicated region
        $region13: #{tpu_custom_call.1} parent=11 // pred_check
          %p147 = pneg %p38
        $region14: #{tpu_custom_call.1} parent=11 // pred_check_branch
          %149 = sbr.rel (%p147) target = $region16
        $region15: #{tpu_custom_call.1} parent=11 // pred_region
          _
        $region16: #{tpu_custom_call.1} parent=11 // pred_fallthru
          _
        // Predicated region
        $region17: #{tpu_custom_call.1} parent=11 // pred_check
          %p150 = pneg %p85
        $region18: #{tpu_custom_call.1} parent=11 // pred_check_branch
          %152 = sbr.rel (%p150) target = $region20
        $region19: #{tpu_custom_call.1} parent=11 // pred_region
          %s154 = ssub.s32 2048, 2048
          %155 = vsyncadd [#allocation9], %s154
          %s156 = sshll.u32 [#allocation8], 4
          %s157 = int_to_ptr.vmem [resolvable:$true] %s156
          %162 = dma.hbm_to_vmem [thread:$0]  %s2, 2048, %s157, [#allocation9], 128, 128, 8
        $region20: #{tpu_custom_call.1} parent=11 // pred_fallthru
          _
        // Predicated region
        $region21: #{tpu_custom_call.1} parent=11 // pred_check
          %p163 = pneg %p106
        $region22: #{tpu_custom_call.1} parent=11 // pred_check_branch
          %165 = sbr.rel (%p163) target = $region24
        $region23: #{tpu_custom_call.1} parent=11 // pred_region
          _
        $region24: #{tpu_custom_call.1} parent=11 // pred_fallthru
          _
      $region12: #{tpu_custom_call.1} parent=5 // pred_fallthru
        _
      %p166 = scmp.lt.s32.totalorder %s17, 2
      // Predicated region
      $region25: #{tpu_custom_call.1} parent=5 // pred_check
        %p167 = pneg %p166
      $region26: #{tpu_custom_call.1} parent=5 // pred_check_branch
        %169 = sbr.rel (%p167) target = $region28
      $region27: #{tpu_custom_call.1} parent=5 // pred_region
        // Predicated region
        $region29: #{tpu_custom_call.1} parent=27 // pred_check
          %p170 = pneg %p58
        $region30: #{tpu_custom_call.1} parent=27 // pred_check_branch
          %172 = sbr.rel (%p170) target = $region32
        $region31: #{tpu_custom_call.1} parent=27 // pred_region
          %s173 = sand.u32 %s48, 1
          %s174 = scalar_lea.sflag [#allocation6], %s173
          %s175 = sand.u32 %s48, 1
          %s176 = smul.addr %s175, 64
          %s177 = scalar_lea.vmem [#allocation5], %s176
          %s178 = smul.u32 4, %s17
          %s180 = ssub.s32 1024, 1024
          %181 = vsyncadd %s174, %s180
          %s182 = smul.addr %s178, 2
          %s183 = smul.addr %s182, 128
          %s184 = scalar_lea.hbm %s1, %s183
          %s185 = sshll.u32 %s177, 4
          %s186 = int_to_ptr.vmem [resolvable:$true] %s185
          %191 = dma.hbm_to_vmem [thread:$0]  %s184, 1024, %s186, %s174, 256, 256, 16
        $region32: #{tpu_custom_call.1} parent=27 // pred_fallthru
          _
      $region28: #{tpu_custom_call.1} parent=5 // pred_fallthru
        _
      %p192 = scmp.le.s32.totalorder 1, %s17
      %p193 = scmp.lt.s32.totalorder %s17, 3
      %p194 = pnand %p192, %p193
      %p195 = pneg %p194
      // Predicated region
      $region33: #{tpu_custom_call.1} parent=5 // pred_check
        _
      $region34: #{tpu_custom_call.1} parent=5 // pred_check_branch
        %197 = sbr.rel (%p194) target = $region36
      $region35: #{tpu_custom_call.1} parent=5 // pred_region
        %s198 = ssub.s32 %s17, 1
        %s199 = sand.u32 %s51, 1
        %s200 = scalar_lea.sflag [#allocation6], %s199
        %s201 = sand.u32 %s51, 1
        %s202 = smul.addr %s201, 64
        %s203 = scalar_lea.vmem [#allocation5], %s202
        // Predicated region
        $region37: #{tpu_custom_call.1} parent=35 // pred_check
          %p204 = pneg %p64
        $region38: #{tpu_custom_call.1} parent=35 // pred_check_branch
          %206 = sbr.rel (%p204) target = $region40
        $region39: #{tpu_custom_call.1} parent=35 // pred_region
          %207 = dma.done %s200, 1024
        $region40: #{tpu_custom_call.1} parent=35 // pred_fallthru
          _
        // Predicated region
        $region41: #{tpu_custom_call.1} parent=35 // pred_check
          %p208 = pneg %p85
        $region42: #{tpu_custom_call.1} parent=35 // pred_check_branch
          %210 = sbr.rel (%p208) target = $region44
        $region43: #{tpu_custom_call.1} parent=35 // pred_region
          %211 = dma.done [#allocation9], 2048
        $region44: #{tpu_custom_call.1} parent=35 // pred_fallthru
          _
        %p212 = pneg %p38
        %p213 = pneg %p35
        %s214 = sand.u32 %s51, 1
        %s215 = scalar_lea.sflag [#allocation6], %s214
        %s216 = sand.u32 %s51, 1
        %s217 = smul.addr %s216, 64
        %s218 = scalar_lea.vmem [#allocation5], %s217
        %p219 = pneg %p64
        %p220 = pneg %p61
        %p221 = pneg %p85
        %p222 = pneg %p82
        %p223 = pneg %p106
        %p224 = pneg %p103
        %p225 = pneg %p132
        %p226 = pneg %p129
        %s227 = sand.u32 %s119, 1
        %s228 = scalar_lea.sflag [#allocation7], %s227
        %s229 = sand.u32 %s119, 1
        %s230 = smul.addr %s229, 128
        %s231 = scalar_lea.vmem [#allocation10], %s230
        %s232 = smul.u32 4, %s22
        %s233 = smul.u32 16, %s22
        %p235 = scmp.eq.s32.totalorder %s22, 0
        // Predicated region
        $region45: #{tpu_custom_call.1} parent=35 // pred_check
          %p236 = pneg %p235
        $region46: #{tpu_custom_call.1} parent=35 // pred_check_branch
          %238 = sbr.rel (%p236) target = $region48
        $region47: #{tpu_custom_call.1} parent=35 // pred_region
          %v239 = vld [vmem:[%s0] sm:$0xf]
          %v240 = vld [vmem:[%s0 + $0x4] sm:$0xf]
          %v241 = vld [vmem:[%s0 + $0x8] sm:$0xf]
          %v242 = vld [vmem:[%s0 + $0xc] sm:$0xf]
          %v243 = vld [vmem:[%s0 + $0x10] sm:$0xf]
          %v244 = vld [vmem:[%s0 + $0x14] sm:$0xf]
          %v245 = vld [vmem:[%s0 + $0x18] sm:$0xf]
          %v246 = vld [vmem:[%s0 + $0x1c] sm:$0xf]
          %v247 = vld [vmem:[%s0 + $0x20] sm:$0xf]
          %v248 = vld [vmem:[%s0 + $0x24] sm:$0xf]
          %v249 = vld [vmem:[%s0 + $0x28] sm:$0xf]
          %v250 = vld [vmem:[%s0 + $0x2c] sm:$0xf]
          %v251 = vld [vmem:[%s0 + $0x30] sm:$0xf]
          %v252 = vld [vmem:[%s0 + $0x34] sm:$0xf]
          %v253 = vld [vmem:[%s0 + $0x38] sm:$0xf]
          %v254 = vld [vmem:[%s0 + $0x3c] sm:$0xf]
          %v255 = vld [vmem:[%s0 + $0x40] sm:$0xf]
          %v256 = vld [vmem:[%s0 + $0x44] sm:$0xf]
          %v257 = vld [vmem:[%s0 + $0x48] sm:$0xf]
          %v258 = vld [vmem:[%s0 + $0x4c] sm:$0xf]
          %v259 = vld [vmem:[%s0 + $0x50] sm:$0xf]
          %v260 = vld [vmem:[%s0 + $0x54] sm:$0xf]
          %v261 = vld [vmem:[%s0 + $0x58] sm:$0xf]
          %v262 = vld [vmem:[%s0 + $0x5c] sm:$0xf]
          %v263 = vld [vmem:[%s0 + $0x60] sm:$0xf]
          %v264 = vld [vmem:[%s0 + $0x64] sm:$0xf]
          %v265 = vld [vmem:[%s0 + $0x68] sm:$0xf]
          %v266 = vld [vmem:[%s0 + $0x6c] sm:$0xf]
          %v267 = vld [vmem:[%s0 + $0x70] sm:$0xf]
          %v268 = vld [vmem:[%s0 + $0x74] sm:$0xf]
          %v269 = vld [vmem:[%s0 + $0x78] sm:$0xf]
          %v270 = vld [vmem:[%s0 + $0x7c] sm:$0xf]
          %v271 = vld [vmem:[#allocation8] sm:$0xff]
          %v272 = vld [vmem:[#allocation8 + $0x8] sm:$0xff]
          %v273 = vld [vmem:[#allocation8 + $0x10] sm:$0xff]
          %v274 = vld [vmem:[#allocation8 + $0x18] sm:$0xff]
          %v275 = vld [vmem:[#allocation8 + $0x20] sm:$0xff]
          %v276 = vld [vmem:[#allocation8 + $0x28] sm:$0xff]
          %v277 = vld [vmem:[#allocation8 + $0x30] sm:$0xff]
          %v278 = vld [vmem:[#allocation8 + $0x38] sm:$0xff]
          %v279 = vld [vmem:[#allocation8 + $0x40] sm:$0xff]
          %v280 = vld [vmem:[#allocation8 + $0x48] sm:$0xff]
          %v281 = vld [vmem:[#allocation8 + $0x50] sm:$0xff]
          %v282 = vld [vmem:[#allocation8 + $0x58] sm:$0xff]
          %v283 = vld [vmem:[#allocation8 + $0x60] sm:$0xff]
          %v284 = vld [vmem:[#allocation8 + $0x68] sm:$0xff]
          %v285 = vld [vmem:[#allocation8 + $0x70] sm:$0xff]
          %v286 = vld [vmem:[#allocation8 + $0x78] sm:$0xff]
          %v319 = vunpack.c.l.b16 %v239
          %v320 = vunpack.c.l.b16 %v240
          %v321 = vunpack.c.l.b16 %v241
          %v322 = vunpack.c.l.b16 %v242
          %v323 = vunpack.c.l.b16 %v243
          %v324 = vunpack.c.l.b16 %v244
          %v325 = vunpack.c.l.b16 %v245
          %v326 = vunpack.c.l.b16 %v246
          %v327 = vunpack.c.l.b16 %v247
          %v328 = vunpack.c.l.b16 %v248
          %v329 = vunpack.c.l.b16 %v249
          %v330 = vunpack.c.l.b16 %v250
          %v331 = vunpack.c.l.b16 %v251
          %v332 = vunpack.c.l.b16 %v252
          %v333 = vunpack.c.l.b16 %v253
          %v334 = vunpack.c.l.b16 %v254
          %v335 = vunpack.c.l.b16 %v255
          %v336 = vunpack.c.l.b16 %v256
          %v337 = vunpack.c.l.b16 %v257
          %v338 = vunpack.c.l.b16 %v258
          %v339 = vunpack.c.l.b16 %v259
          %v340 = vunpack.c.l.b16 %v260
          %v341 = vunpack.c.l.b16 %v261
          %v342 = vunpack.c.l.b16 %v262
          %v343 = vunpack.c.l.b16 %v263
          %v344 = vunpack.c.l.b16 %v264
          %v345 = vunpack.c.l.b16 %v265
          %v346 = vunpack.c.l.b16 %v266
          %v347 = vunpack.c.l.b16 %v267
          %v348 = vunpack.c.l.b16 %v268
          %v349 = vunpack.c.l.b16 %v269
          %v350 = vunpack.c.l.b16 %v270
          %v351 = vpack.c.b16 %v320, %v319
          %v352 = vpack.c.b16 %v322, %v321
          %v353 = vpack.c.b16 %v324, %v323
          %v354 = vpack.c.b16 %v326, %v325
          %v355 = vpack.c.b16 %v328, %v327
          %v356 = vpack.c.b16 %v330, %v329
          %v357 = vpack.c.b16 %v332, %v331
          %v358 = vpack.c.b16 %v334, %v333
          %v359 = vpack.c.b16 %v336, %v335
          %v360 = vpack.c.b16 %v338, %v337
          %v361 = vpack.c.b16 %v340, %v339
          %v362 = vpack.c.b16 %v342, %v341
          %v363 = vpack.c.b16 %v344, %v343
          %v364 = vpack.c.b16 %v346, %v345
          %v365 = vpack.c.b16 %v348, %v347
          %v366 = vpack.c.b16 %v350, %v349
          %v399 = vunpack.c.l.b16 %v271
          %v400 = vunpack.c.h.b16 %v271
          %v401 = vunpack.c.l.b16 %v272
          %v402 = vunpack.c.h.b16 %v272
          %v403 = vunpack.c.l.b16 %v273
          %v404 = vunpack.c.h.b16 %v273
          %v405 = vunpack.c.l.b16 %v274
          %v406 = vunpack.c.h.b16 %v274
          %v407 = vunpack.c.l.b16 %v275
          %v408 = vunpack.c.h.b16 %v275
          %v409 = vunpack.c.l.b16 %v276
          %v410 = vunpack.c.h.b16 %v276
          %v411 = vunpack.c.l.b16 %v277
          %v412 = vunpack.c.h.b16 %v277
          %v413 = vunpack.c.l.b16 %v278
          %v414 = vunpack.c.h.b16 %v278
          %v415 = vunpack.c.l.b16 %v279
          %v416 = vunpack.c.h.b16 %v279
          %v417 = vunpack.c.l.b16 %v280
          %v418 = vunpack.c.h.b16 %v280
          %v419 = vunpack.c.l.b16 %v281
          %v420 = vunpack.c.h.b16 %v281
          %v421 = vunpack.c.l.b16 %v282
          %v422 = vunpack.c.h.b16 %v282
          %v423 = vunpack.c.l.b16 %v283
          %v424 = vunpack.c.h.b16 %v283
          %v425 = vunpack.c.l.b16 %v284
          %v426 = vunpack.c.h.b16 %v284
          %v427 = vunpack.c.l.b16 %v285
          %v428 = vunpack.c.h.b16 %v285
          %v429 = vunpack.c.l.b16 %v286
          %v430 = vunpack.c.h.b16 %v286
          %v431 = vpack.c.b16 %v401, %v399
          %v432 = vpack.c.b16 %v402, %v400
          %v433 = vpack.c.b16 %v405, %v403
          %v434 = vpack.c.b16 %v406, %v404
          %v435 = vpack.c.b16 %v409, %v407
          %v436 = vpack.c.b16 %v410, %v408
          %v437 = vpack.c.b16 %v413, %v411
          %v438 = vpack.c.b16 %v414, %v412
          %v439 = vpack.c.b16 %v417, %v415
          %v440 = vpack.c.b16 %v418, %v416
          %v441 = vpack.c.b16 %v421, %v419
          %v442 = vpack.c.b16 %v422, %v420
          %v443 = vpack.c.b16 %v425, %v423
          %v444 = vpack.c.b16 %v426, %v424
          %v445 = vpack.c.b16 %v429, %v427
          %v446 = vpack.c.b16 %v430, %v428
          %463 = vmatprep.subr.bf16.mxu0 %v446
          %464 = vmatpush1.bf16.msra.mxu0 %v445
          %465 = vmatprep.subr.bf16.mxu0 %v444
          %466 = vmatpush1.bf16.msra.mxu0 %v443
          %467 = vmatprep.subr.bf16.mxu0 %v442
          %468 = vmatpush1.bf16.msra.mxu0 %v441
          %469 = vmatprep.subr.bf16.mxu0 %v440
          %470 = vmatpush1.bf16.msra.mxu0 %v439
          %471 = vmatprep.subr.bf16.mxu0 %v438
          %472 = vmatpush1.bf16.msra.mxu0 %v437
          %473 = vmatprep.subr.bf16.mxu0 %v436
          %474 = vmatpush1.bf16.msra.mxu0 %v435
          %475 = vmatprep.subr.bf16.mxu0 %v434
          %476 = vmatpush1.bf16.msra.mxu0 %v433
          %477 = vmatprep.subr.bf16.mxu0 %v432
          %478 = vmatpush1.bf16.msra.mxu0 %v431
          %479 = vmatprep.subr.bf16.mxu0 0
          %480 = vmatpush2.bf16.msra.mxu0 0
          %481 = vmatprep.subr.bf16.mxu0 0
          %482 = vmatpush2.bf16.msra.mxu0 0
          %483 = vmatprep.subr.bf16.mxu0 0
          %484 = vmatpush2.bf16.msra.mxu0 0
          %485 = vmatprep.subr.bf16.mxu0 0
          %486 = vmatpush2.bf16.msra.mxu0 0
          %487 = vmatprep.subr.bf16.mxu0 0
          %488 = vmatpush2.bf16.msra.mxu0 0
          %489 = vmatprep.subr.bf16.mxu0 0
          %490 = vmatpush2.bf16.msra.mxu0 0
          %491 = vmatprep.subr.bf16.mxu0 0
          %492 = vmatpush2.bf16.msra.mxu0 0
          %493 = vmatprep.subr.bf16.mxu0 0
          %494 = vmatpush2.bf16.msra.mxu0 0
          %495 = vmatprep.mubr.bf16.mxu0 0
          %496 = vmatmul.mubr.bf16.gmra.mxu0 %v351
          %v497 = vpop.f32.mrf.mxu0
          %v498 = vadd.f32 0.0, %v497
          %v499 = vpop.f32.mrf.mxu0
          %v500 = vadd.f32 0.0, %v499
          %v501 = vpop.f32.mrf.mxu0
          %v502 = vadd.f32 0.0, %v501
          %v503 = vpop.f32.mrf.mxu0
          %v504 = vadd.f32 0.0, %v503
          %505 = vmatprep.mubr.bf16.mxu0 0
          %506 = vmatmul.mubr.bf16.gmra.mxu0 %v352
          %v507 = vpop.f32.mrf.mxu0
          %v508 = vadd.f32 0.0, %v507
          %v509 = vpop.f32.mrf.mxu0
          %v510 = vadd.f32 0.0, %v509
          %v511 = vpop.f32.mrf.mxu0
          %v512 = vadd.f32 0.0, %v511
          %v513 = vpop.f32.mrf.mxu0
          %v514 = vadd.f32 0.0, %v513
          %515 = vmatprep.mubr.bf16.mxu0 0
          %516 = vmatmul.mubr.bf16.gmra.mxu0 %v353
          %v517 = vpop.f32.mrf.mxu0
          %v518 = vadd.f32 0.0, %v517
          %v519 = vpop.f32.mrf.mxu0
          %v520 = vadd.f32 0.0, %v519
          %v521 = vpop.f32.mrf.mxu0
          %v522 = vadd.f32 0.0, %v521
          %v523 = vpop.f32.mrf.mxu0
          %v524 = vadd.f32 0.0, %v523
          %525 = vmatprep.mubr.bf16.mxu0 0
          %526 = vmatmul.mubr.bf16.gmra.mxu0 %v354
          %v527 = vpop.f32.mrf.mxu0
          %v528 = vadd.f32 0.0, %v527
          %v529 = vpop.f32.mrf.mxu0
          %v530 = vadd.f32 0.0, %v529
          %v531 = vpop.f32.mrf.mxu0
          %v532 = vadd.f32 0.0, %v531
          %v533 = vpop.f32.mrf.mxu0
          %v534 = vadd.f32 0.0, %v533
          %535 = vmatprep.mubr.bf16.mxu0 0
          %536 = vmatmul.mubr.bf16.gmra.mxu0 %v355
          %v537 = vpop.f32.mrf.mxu0
          %v538 = vadd.f32 0.0, %v537
          %v539 = vpop.f32.mrf.mxu0
          %v540 = vadd.f32 0.0, %v539
          %v541 = vpop.f32.mrf.mxu0
          %v542 = vadd.f32 0.0, %v541
          %v543 = vpop.f32.mrf.mxu0
          %v544 = vadd.f32 0.0, %v543
          %545 = vmatprep.mubr.bf16.mxu0 0
          %546 = vmatmul.mubr.bf16.gmra.mxu0 %v356
          %v547 = vpop.f32.mrf.mxu0
          %v548 = vadd.f32 0.0, %v547
          %v549 = vpop.f32.mrf.mxu0
          %v550 = vadd.f32 0.0, %v549
          %v551 = vpop.f32.mrf.mxu0
          %v552 = vadd.f32 0.0, %v551
          %v553 = vpop.f32.mrf.mxu0
          %v554 = vadd.f32 0.0, %v553
          %555 = vmatprep.mubr.bf16.mxu0 0
          %556 = vmatmul.mubr.bf16.gmra.mxu0 %v357
          %v557 = vpop.f32.mrf.mxu0
          %v558 = vadd.f32 0.0, %v557
          %v559 = vpop.f32.mrf.mxu0
          %v560 = vadd.f32 0.0, %v559
          %v561 = vpop.f32.mrf.mxu0
          %v562 = vadd.f32 0.0, %v561
          %v563 = vpop.f32.mrf.mxu0
          %v564 = vadd.f32 0.0, %v563
          %565 = vmatprep.mubr.bf16.mxu0 0
          %566 = vmatmul.mubr.bf16.gmra.mxu0 %v358
          %v567 = vpop.f32.mrf.mxu0
          %v568 = vadd.f32 0.0, %v567
          %v569 = vpop.f32.mrf.mxu0
          %v570 = vadd.f32 0.0, %v569
          %v571 = vpop.f32.mrf.mxu0
          %v572 = vadd.f32 0.0, %v571
          %v573 = vpop.f32.mrf.mxu0
          %v574 = vadd.f32 0.0, %v573
          %575 = vmatprep.mubr.bf16.mxu0 0
          %576 = vmatmul.mubr.bf16.gmra.mxu0 %v359
          %v577 = vpop.f32.mrf.mxu0
          %v578 = vadd.f32 0.0, %v577
          %v579 = vpop.f32.mrf.mxu0
          %v580 = vadd.f32 0.0, %v579
          %v581 = vpop.f32.mrf.mxu0
          %v582 = vadd.f32 0.0, %v581
          %v583 = vpop.f32.mrf.mxu0
          %v584 = vadd.f32 0.0, %v583
          %585 = vmatprep.mubr.bf16.mxu0 0
          %586 = vmatmul.mubr.bf16.gmra.mxu0 %v360
          %v587 = vpop.f32.mrf.mxu0
          %v588 = vadd.f32 0.0, %v587
          %v589 = vpop.f32.mrf.mxu0
          %v590 = vadd.f32 0.0, %v589
          %v591 = vpop.f32.mrf.mxu0
          %v592 = vadd.f32 0.0, %v591
          %v593 = vpop.f32.mrf.mxu0
          %v594 = vadd.f32 0.0, %v593
          %595 = vmatprep.mubr.bf16.mxu0 0
          %596 = vmatmul.mubr.bf16.gmra.mxu0 %v361
          %v597 = vpop.f32.mrf.mxu0
          %v598 = vadd.f32 0.0, %v597
          %v599 = vpop.f32.mrf.mxu0
          %v600 = vadd.f32 0.0, %v599
          %v601 = vpop.f32.mrf.mxu0
          %v602 = vadd.f32 0.0, %v601
          %v603 = vpop.f32.mrf.mxu0
          %v604 = vadd.f32 0.0, %v603
          %605 = vmatprep.mubr.bf16.mxu0 0
          %606 = vmatmul.mubr.bf16.gmra.mxu0 %v362
          %v607 = vpop.f32.mrf.mxu0
          %v608 = vadd.f32 0.0, %v607
          %v609 = vpop.f32.mrf.mxu0
          %v610 = vadd.f32 0.0, %v609
          %v611 = vpop.f32.mrf.mxu0
          %v612 = vadd.f32 0.0, %v611
          %v613 = vpop.f32.mrf.mxu0
          %v614 = vadd.f32 0.0, %v613
          %615 = vmatprep.mubr.bf16.mxu0 0
          %616 = vmatmul.mubr.bf16.gmra.mxu0 %v363
          %v617 = vpop.f32.mrf.mxu0
          %v618 = vadd.f32 0.0, %v617
          %v619 = vpop.f32.mrf.mxu0
          %v620 = vadd.f32 0.0, %v619
          %v621 = vpop.f32.mrf.mxu0
          %v622 = vadd.f32 0.0, %v621
          %v623 = vpop.f32.mrf.mxu0
          %v624 = vadd.f32 0.0, %v623
          %625 = vmatprep.mubr.bf16.mxu0 0
          %626 = vmatmul.mubr.bf16.gmra.mxu0 %v364
          %v627 = vpop.f32.mrf.mxu0
          %v628 = vadd.f32 0.0, %v627
          %v629 = vpop.f32.mrf.mxu0
          %v630 = vadd.f32 0.0, %v629
          %v631 = vpop.f32.mrf.mxu0
          %v632 = vadd.f32 0.0, %v631
          %v633 = vpop.f32.mrf.mxu0
          %v634 = vadd.f32 0.0, %v633
          %635 = vmatprep.mubr.bf16.mxu0 0
          %636 = vmatmul.mubr.bf16.gmra.mxu0 %v365
          %v637 = vpop.f32.mrf.mxu0
          %v638 = vadd.f32 0.0, %v637
          %v639 = vpop.f32.mrf.mxu0
          %v640 = vadd.f32 0.0, %v639
          %v641 = vpop.f32.mrf.mxu0
          %v642 = vadd.f32 0.0, %v641
          %v643 = vpop.f32.mrf.mxu0
          %v644 = vadd.f32 0.0, %v643
          %645 = vmatprep.mubr.bf16.mxu0 0
          %646 = vmatmul.mubr.bf16.gmra.mxu0 %v366
          %v647 = vpop.f32.mrf.mxu0
          %v648 = vadd.f32 0.0, %v647
          %v649 = vpop.f32.mrf.mxu0
          %v650 = vadd.f32 0.0, %v649
          %v651 = vpop.f32.mrf.mxu0
          %v652 = vadd.f32 0.0, %v651
          %v653 = vpop.f32.mrf.mxu0
          %v654 = vadd.f32 0.0, %v653
          %655 = vdwg.mxu0
          %v656 = vpack.c.bf16 %v502, %v498
          %v657 = vpack.c.bf16 %v512, %v508
          %v658 = vpack.c.bf16 %v522, %v518
          %v659 = vpack.c.bf16 %v532, %v528
          %v660 = vpack.c.bf16 %v542, %v538
          %v661 = vpack.c.bf16 %v552, %v548
          %v662 = vpack.c.bf16 %v562, %v558
          %v663 = vpack.c.bf16 %v572, %v568
          %v664 = vpack.c.bf16 %v582, %v578
          %v665 = vpack.c.bf16 %v592, %v588
          %v666 = vpack.c.bf16 %v602, %v598
          %v667 = vpack.c.bf16 %v612, %v608
          %v668 = vpack.c.bf16 %v622, %v618
          %v669 = vpack.c.bf16 %v632, %v628
          %v670 = vpack.c.bf16 %v642, %v638
          %v671 = vpack.c.bf16 %v652, %v648
          %v688 = vunpack.c.l.b16 %v656
          %v689 = vunpack.c.h.b16 %v656
          %v690 = vunpack.c.l.b16 %v657
          %v691 = vunpack.c.h.b16 %v657
          %v692 = vunpack.c.l.b16 %v658
          %v693 = vunpack.c.h.b16 %v658
          %v694 = vunpack.c.l.b16 %v659
          %v695 = vunpack.c.h.b16 %v659
          %v696 = vunpack.c.l.b16 %v660
          %v697 = vunpack.c.h.b16 %v660
          %v698 = vunpack.c.l.b16 %v661
          %v699 = vunpack.c.h.b16 %v661
          %v700 = vunpack.c.l.b16 %v662
          %v701 = vunpack.c.h.b16 %v662
          %v702 = vunpack.c.l.b16 %v663
          %v703 = vunpack.c.h.b16 %v663
          %v704 = vunpack.c.l.b16 %v664
          %v705 = vunpack.c.h.b16 %v664
          %v706 = vunpack.c.l.b16 %v665
          %v707 = vunpack.c.h.b16 %v665
          %v708 = vunpack.c.l.b16 %v666
          %v709 = vunpack.c.h.b16 %v666
          %v710 = vunpack.c.l.b16 %v667
          %v711 = vunpack.c.h.b16 %v667
          %v712 = vunpack.c.l.b16 %v668
          %v713 = vunpack.c.h.b16 %v668
          %v714 = vunpack.c.l.b16 %v669
          %v715 = vunpack.c.h.b16 %v669
          %v716 = vunpack.c.l.b16 %v670
          %v717 = vunpack.c.h.b16 %v670
          %v718 = vunpack.c.l.b16 %v671
          %v719 = vunpack.c.h.b16 %v671
          %v720 = vpack.c.b16 %v688, %v688
          %v721 = vpack.c.b16 %v689, %v689
          %v722 = vpack.c.b16 %v690, %v690
          %v723 = vpack.c.b16 %v691, %v691
          %v724 = vpack.c.b16 %v692, %v692
          %v725 = vpack.c.b16 %v693, %v693
          %v726 = vpack.c.b16 %v694, %v694
          %v727 = vpack.c.b16 %v695, %v695
          %v728 = vpack.c.b16 %v696, %v696
          %v729 = vpack.c.b16 %v697, %v697
          %v730 = vpack.c.b16 %v698, %v698
          %v731 = vpack.c.b16 %v699, %v699
          %v732 = vpack.c.b16 %v700, %v700
          %v733 = vpack.c.b16 %v701, %v701
          %v734 = vpack.c.b16 %v702, %v702
          %v735 = vpack.c.b16 %v703, %v703
          %v736 = vpack.c.b16 %v704, %v704
          %v737 = vpack.c.b16 %v705, %v705
          %v738 = vpack.c.b16 %v706, %v706
          %v739 = vpack.c.b16 %v707, %v707
          %v740 = vpack.c.b16 %v708, %v708
          %v741 = vpack.c.b16 %v709, %v709
          %v742 = vpack.c.b16 %v710, %v710
          %v743 = vpack.c.b16 %v711, %v711
          %v744 = vpack.c.b16 %v712, %v712
          %v745 = vpack.c.b16 %v713, %v713
          %v746 = vpack.c.b16 %v714, %v714
          %v747 = vpack.c.b16 %v715, %v715
          %v748 = vpack.c.b16 %v716, %v716
          %v749 = vpack.c.b16 %v717, %v717
          %v750 = vpack.c.b16 %v718, %v718
          %v751 = vpack.c.b16 %v719, %v719
          %784 = vst [vmem:[#allocation2] sm:$0xf] %v720
          %785 = vst [vmem:[#allocation2 + $0x4] sm:$0xf] %v721
          %786 = vst [vmem:[#allocation2 + $0x8] sm:$0xf] %v722
          %787 = vst [vmem:[#allocation2 + $0xc] sm:$0xf] %v723
          %788 = vst [vmem:[#allocation2 + $0x10] sm:$0xf] %v724
          %789 = vst [vmem:[#allocation2 + $0x14] sm:$0xf] %v725
          %790 = vst [vmem:[#allocation2 + $0x18] sm:$0xf] %v726
          %791 = vst [vmem:[#allocation2 + $0x1c] sm:$0xf] %v727
          %792 = vst [vmem:[#allocation2 + $0x20] sm:$0xf] %v728
          %793 = vst [vmem:[#allocation2 + $0x24] sm:$0xf] %v729
          %794 = vst [vmem:[#allocation2 + $0x28] sm:$0xf] %v730
          %795 = vst [vmem:[#allocation2 + $0x2c] sm:$0xf] %v731
          %796 = vst [vmem:[#allocation2 + $0x30] sm:$0xf] %v732
          %797 = vst [vmem:[#allocation2 + $0x34] sm:$0xf] %v733
          %798 = vst [vmem:[#allocation2 + $0x38] sm:$0xf] %v734
          %799 = vst [vmem:[#allocation2 + $0x3c] sm:$0xf] %v735
          %800 = vst [vmem:[#allocation2 + $0x40] sm:$0xf] %v736
          %801 = vst [vmem:[#allocation2 + $0x44] sm:$0xf] %v737
          %802 = vst [vmem:[#allocation2 + $0x48] sm:$0xf] %v738
          %803 = vst [vmem:[#allocation2 + $0x4c] sm:$0xf] %v739
          %804 = vst [vmem:[#allocation2 + $0x50] sm:$0xf] %v740
          %805 = vst [vmem:[#allocation2 + $0x54] sm:$0xf] %v741
          %806 = vst [vmem:[#allocation2 + $0x58] sm:$0xf] %v742
          %807 = vst [vmem:[#allocation2 + $0x5c] sm:$0xf] %v743
          %808 = vst [vmem:[#allocation2 + $0x60] sm:$0xf] %v744
          %809 = vst [vmem:[#allocation2 + $0x64] sm:$0xf] %v745
          %810 = vst [vmem:[#allocation2 + $0x68] sm:$0xf] %v746
          %811 = vst [vmem:[#allocation2 + $0x6c] sm:$0xf] %v747
          %812 = vst [vmem:[#allocation2 + $0x70] sm:$0xf] %v748
          %813 = vst [vmem:[#allocation2 + $0x74] sm:$0xf] %v749
          %814 = vst [vmem:[#allocation2 + $0x78] sm:$0xf] %v750
          %815 = vst [vmem:[#allocation2 + $0x7c] sm:$0xf] %v751
          %vm816 = vcmask 7168
          %817 = vst.msk [vmem:[#allocation3] sm:$0xff] %vm816, %v500
          %818 = vst.msk [vmem:[#allocation3 + $0x8] sm:$0xff] %vm816, %v504
          %819 = vst.msk [vmem:[#allocation3 + $0x10] sm:$0xff] %vm816, %v510
          %820 = vst.msk [vmem:[#allocation3 + $0x18] sm:$0xff] %vm816, %v514
          %821 = vst.msk [vmem:[#allocation3 + $0x20] sm:$0xff] %vm816, %v520
          %822 = vst.msk [vmem:[#allocation3 + $0x28] sm:$0xff] %vm816, %v524
          %823 = vst.msk [vmem:[#allocation3 + $0x30] sm:$0xff] %vm816, %v530
          %824 = vst.msk [vmem:[#allocation3 + $0x38] sm:$0xff] %vm816, %v534
          %825 = vst.msk [vmem:[#allocation3 + $0x40] sm:$0xff] %vm816, %v540
          %826 = vst.msk [vmem:[#allocation3 + $0x48] sm:$0xff] %vm816, %v544
          %827 = vst.msk [vmem:[#allocation3 + $0x50] sm:$0xff] %vm816, %v550
          %828 = vst.msk [vmem:[#allocation3 + $0x58] sm:$0xff] %vm816, %v554
          %829 = vst.msk [vmem:[#allocation3 + $0x60] sm:$0xff] %vm816, %v560
          %830 = vst.msk [vmem:[#allocation3 + $0x68] sm:$0xff] %vm816, %v564
          %831 = vst.msk [vmem:[#allocation3 + $0x70] sm:$0xff] %vm816, %v570
          %832 = vst.msk [vmem:[#allocation3 + $0x78] sm:$0xff] %vm816, %v574
          %833 = vst.msk [vmem:[#allocation3 + $0x80] sm:$0xff] %vm816, %v580
          %834 = vst.msk [vmem:[#allocation3 + $0x88] sm:$0xff] %vm816, %v584
          %835 = vst.msk [vmem:[#allocation3 + $0x90] sm:$0xff] %vm816, %v590
          %836 = vst.msk [vmem:[#allocation3 + $0x98] sm:$0xff] %vm816, %v594
          %837 = vst.msk [vmem:[#allocation3 + $0xa0] sm:$0xff] %vm816, %v600
          %838 = vst.msk [vmem:[#allocation3 + $0xa8] sm:$0xff] %vm816, %v604
          %839 = vst.msk [vmem:[#allocation3 + $0xb0] sm:$0xff] %vm816, %v610
          %840 = vst.msk [vmem:[#allocation3 + $0xb8] sm:$0xff] %vm816, %v614
          %841 = vst.msk [vmem:[#allocation3 + $0xc0] sm:$0xff] %vm816, %v620
          %842 = vst.msk [vmem:[#allocation3 + $0xc8] sm:$0xff] %vm816, %v624
          %843 = vst.msk [vmem:[#allocation3 + $0xd0] sm:$0xff] %vm816, %v630
          %844 = vst.msk [vmem:[#allocation3 + $0xd8] sm:$0xff] %vm816, %v634
          %845 = vst.msk [vmem:[#allocation3 + $0xe0] sm:$0xff] %vm816, %v640
          %846 = vst.msk [vmem:[#allocation3 + $0xe8] sm:$0xff] %vm816, %v644
          %847 = vst.msk [vmem:[#allocation3 + $0xf0] sm:$0xff] %vm816, %v650
          %848 = vst.msk [vmem:[#allocation3 + $0xf8] sm:$0xff] %vm816, %v654
          %v849 = vld [vmem:[%s3] sm:$0xff]
          %v850 = vld [vmem:[%s3 + $0x8] sm:$0xff]
          %v851 = vld [vmem:[%s3 + $0x10] sm:$0xff]
          %v852 = vld [vmem:[%s3 + $0x18] sm:$0xff]
          %v853 = vld [vmem:[%s3 + $0x20] sm:$0xff]
          %v854 = vld [vmem:[%s3 + $0x28] sm:$0xff]
          %v855 = vld [vmem:[%s3 + $0x30] sm:$0xff]
          %v856 = vld [vmem:[%s3 + $0x38] sm:$0xff]
          %v857 = vld [vmem:[%s3 + $0x40] sm:$0xff]
          %v858 = vld [vmem:[%s3 + $0x48] sm:$0xff]
          %v859 = vld [vmem:[%s3 + $0x50] sm:$0xff]
          %v860 = vld [vmem:[%s3 + $0x58] sm:$0xff]
          %v861 = vld [vmem:[%s3 + $0x60] sm:$0xff]
          %v862 = vld [vmem:[%s3 + $0x68] sm:$0xff]
          %v863 = vld [vmem:[%s3 + $0x70] sm:$0xff]
          %v864 = vld [vmem:[%s3 + $0x78] sm:$0xff]
          %865 = vxpose.xlu0.b32.start [1/16] %v849, 128
          %866 = vxpose.xlu0.b32.cont [2/16] %v850, 128
          %867 = vxpose.xlu0.b32.cont [3/16] %v851, 128
          %868 = vxpose.xlu0.b32.cont [4/16] %v852, 128
          %869 = vxpose.xlu0.b32.cont [5/16] %v853, 128
          %870 = vxpose.xlu0.b32.cont [6/16] %v854, 128
          %871 = vxpose.xlu0.b32.cont [7/16] %v855, 128
          %872 = vxpose.xlu0.b32.cont [8/16] %v856, 128
          %873 = vxpose.xlu0.b32.cont [9/16] %v857, 128
          %874 = vxpose.xlu0.b32.cont [10/16] %v858, 128
          %875 = vxpose.xlu0.b32.cont [11/16] %v859, 128
          %876 = vxpose.xlu0.b32.cont [12/16] %v860, 128
          %877 = vxpose.xlu0.b32.cont [13/16] %v861, 128
          %878 = vxpose.xlu0.b32.cont [14/16] %v862, 128
          %879 = vxpose.xlu0.b32.cont [15/16] %v863, 128
          %880 = vxpose.xlu0.b32.end [16/16] %v864, 128
          %v881 = vpop.trf.xlu0
          %v882 = vpop.trf.xlu0
          %v883 = vpop.trf.xlu0
          %v884 = vpop.trf.xlu0
          %v885 = vpop.trf.xlu0
          %v886 = vpop.trf.xlu0
          %v887 = vpop.trf.xlu0
          %v888 = vpop.trf.xlu0
          %v889 = vpop.trf.xlu0
          %v890 = vpop.trf.xlu0
          %v891 = vpop.trf.xlu0
          %v892 = vpop.trf.xlu0
          %v893 = vpop.trf.xlu0
          %v894 = vpop.trf.xlu0
          %v895 = vpop.trf.xlu0
          %v896 = vpop.trf.xlu0
          %897 = vmatprep.subr.mxu0 0.0
          %898 = vmatpush1.xpose.msra.mxu0 %v572
          %899 = vmatprep.subr.mxu0 0.0
          %900 = vmatpush1.xpose.msra.mxu0 %v568
          %901 = vmatprep.subr.mxu0 0.0
          %902 = vmatpush1.xpose.msra.mxu0 %v562
          %903 = vmatprep.subr.mxu0 0.0
          %904 = vmatpush1.xpose.msra.mxu0 %v558
          %905 = vmatprep.subr.mxu0 0.0
          %906 = vmatpush1.xpose.msra.mxu0 %v552
          %907 = vmatprep.subr.mxu0 0.0
          %908 = vmatpush1.xpose.msra.mxu0 %v548
          %909 = vmatprep.subr.mxu0 0.0
          %910 = vmatpush1.xpose.msra.mxu0 %v542
          %911 = vmatprep.subr.mxu0 0.0
          %912 = vmatpush1.xpose.msra.mxu0 %v538
          %913 = vmatprep.subr.mxu0 0.0
          %914 = vmatpush1.xpose.msra.mxu0 %v532
          %915 = vmatprep.subr.mxu0 0.0
          %916 = vmatpush1.xpose.msra.mxu0 %v528
          %917 = vmatprep.subr.mxu0 0.0
          %918 = vmatpush1.xpose.msra.mxu0 %v522
          %919 = vmatprep.subr.mxu0 0.0
          %920 = vmatpush1.xpose.msra.mxu0 %v518
          %921 = vmatprep.subr.mxu0 0.0
          %922 = vmatpush1.xpose.msra.mxu0 %v512
          %923 = vmatprep.subr.mxu0 0.0
          %924 = vmatpush1.xpose.msra.mxu0 %v508
          %925 = vmatprep.subr.mxu0 0.0
          %926 = vmatpush1.xpose.msra.mxu0 %v502
          %927 = vmatprep.subr.mxu0 0.0
          %928 = vmatpush1.xpose.msra.mxu0 %v498
          %929 = vmatprep.subr.mxu0 0.0
          %930 = vmatpush2.xpose.msra.mxu0 %v652
          %931 = vmatprep.subr.mxu0 0.0
          %932 = vmatpush2.xpose.msra.mxu0 %v648
          %933 = vmatprep.subr.mxu0 0.0
          %934 = vmatpush2.xpose.msra.mxu0 %v642
          %935 = vmatprep.subr.mxu0 0.0
          %936 = vmatpush2.xpose.msra.mxu0 %v638
          %937 = vmatprep.subr.mxu0 0.0
          %938 = vmatpush2.xpose.msra.mxu0 %v632
          %939 = vmatprep.subr.mxu0 0.0
          %940 = vmatpush2.xpose.msra.mxu0 %v628
          %941 = vmatprep.subr.mxu0 0.0
          %942 = vmatpush2.xpose.msra.mxu0 %v622
          %943 = vmatprep.subr.mxu0 0.0
          %944 = vmatpush2.xpose.msra.mxu0 %v618
          %945 = vmatprep.subr.mxu0 0.0
          %946 = vmatpush2.xpose.msra.mxu0 %v612
          %947 = vmatprep.subr.mxu0 0.0
          %948 = vmatpush2.xpose.msra.mxu0 %v608
          %949 = vmatprep.subr.mxu0 0.0
          %950 = vmatpush2.xpose.msra.mxu0 %v602
          %951 = vmatprep.subr.mxu0 0.0
          %952 = vmatpush2.xpose.msra.mxu0 %v598
          %953 = vmatprep.subr.mxu0 0.0
          %954 = vmatpush2.xpose.msra.mxu0 %v592
          %955 = vmatprep.subr.mxu0 0.0
          %956 = vmatpush2.xpose.msra.mxu0 %v588
          %957 = vmatprep.subr.mxu0 0.0
          %958 = vmatpush2.xpose.msra.mxu0 %v582
          %959 = vmatprep.subr.mxu0 0.0
          %960 = vmatpush2.xpose.msra.mxu0 %v578
          %961 = vmatprep.mubr.f32.mxu0 0.0
          %962 = vmatmul.mubr.f32.gmra.mxu0 %v881
          %v963 = vpop.f32.mrf.mxu0
          %v964 = vadd.f32 0.0, %v963
          %v965 = vpop.f32.mrf.mxu0
          %v966 = vadd.f32 0.0, %v965
          %967 = vdwg.mxu0
          %v970 = vcombine.low %v964, %v966
          %v972 = vunpack.c.l.s4 1966171168
          %v973 = vunpack.c.0.s8 %v972
          %v974 = vlaneseq
          %v975 = vshrl.u32 %v974, 7
          %v976 = vsub.s32 %v973, %v975
          %v977 = vrot.slane %v970, %v976
          %v979 = vunpack.c.l.s4 1966171168
          %v980 = vunpack.c.0.s8 %v979
          %v981 = vlaneseq
          %v982 = vshrl.u32 %v981, 7
          %v983 = vsub.s32 %v980, %v982
          %v984 = vrot.slane %v977, %v983
          %v986 = vlaneseq
          %vm987 = vcmp.ge.s32.totalorder %v986, 0
          %vm988 = vcmp.lt.s32.totalorder %v986, 256
          %vm989 = vmand %vm987, %vm988
          %990 = vst.msk [vmem:[#allocation4] sm:$0x3] %vm989, %v984
        $region48: #{tpu_custom_call.1} parent=35 // pred_fallthru
          _
        %s991 = smul.u32 %s22, 128
        %s992 = scalar_lea.vmem [#allocation3], %s991
        %v993 = vld [vmem:[%s992] sm:$0xff]
        %v994 = vld [vmem:[%s992 + $0x8] sm:$0xff]
        %v995 = vld [vmem:[%s992 + $0x10] sm:$0xff]
        %v996 = vld [vmem:[%s992 + $0x18] sm:$0xff]
        %v997 = vld [vmem:[%s992 + $0x20] sm:$0xff]
        %v998 = vld [vmem:[%s992 + $0x28] sm:$0xff]
        %v999 = vld [vmem:[%s992 + $0x30] sm:$0xff]
        %v1000 = vld [vmem:[%s992 + $0x38] sm:$0xff]
        %v1001 = vld [vmem:[%s992 + $0x40] sm:$0xff]
        %v1002 = vld [vmem:[%s992 + $0x48] sm:$0xff]
        %v1003 = vld [vmem:[%s992 + $0x50] sm:$0xff]
        %v1004 = vld [vmem:[%s992 + $0x58] sm:$0xff]
        %v1005 = vld [vmem:[%s992 + $0x60] sm:$0xff]
        %v1006 = vld [vmem:[%s992 + $0x68] sm:$0xff]
        %v1007 = vld [vmem:[%s992 + $0x70] sm:$0xff]
        %v1008 = vld [vmem:[%s992 + $0x78] sm:$0xff]
        %v1009 = vld [vmem:[#allocation4] sm:$0x3]
        %1011 = vset.pattern.permute.xlu0 0
        %1012 = vperm.xlu0 %1011, %v993
        %v1013 = vpop.permute.xlu0 %1012
        %1016 = vset.pattern.permute.xlu0 0
        %1017 = vperm.xlu0 %1016, %v994
        %v1018 = vpop.permute.xlu0 %1017
        %1021 = vset.pattern.permute.xlu0 0
        %1022 = vperm.xlu0 %1021, %v995
        %v1023 = vpop.permute.xlu0 %1022
        %1026 = vset.pattern.permute.xlu0 0
        %1027 = vperm.xlu0 %1026, %v996
        %v1028 = vpop.permute.xlu0 %1027
        %1031 = vset.pattern.permute.xlu0 0
        %1032 = vperm.xlu0 %1031, %v997
        %v1033 = vpop.permute.xlu0 %1032
        %1036 = vset.pattern.permute.xlu0 0
        %1037 = vperm.xlu0 %1036, %v998
        %v1038 = vpop.permute.xlu0 %1037
        %1041 = vset.pattern.permute.xlu0 0
        %1042 = vperm.xlu0 %1041, %v999
        %v1043 = vpop.permute.xlu0 %1042
        %1046 = vset.pattern.permute.xlu0 0
        %1047 = vperm.xlu0 %1046, %v1000
        %v1048 = vpop.permute.xlu0 %1047
        %1051 = vset.pattern.permute.xlu0 0
        %1052 = vperm.xlu0 %1051, %v1001
        %v1053 = vpop.permute.xlu0 %1052
        %1056 = vset.pattern.permute.xlu0 0
        %1057 = vperm.xlu0 %1056, %v1002
        %v1058 = vpop.permute.xlu0 %1057
        %1061 = vset.pattern.permute.xlu0 0
        %1062 = vperm.xlu0 %1061, %v1003
        %v1063 = vpop.permute.xlu0 %1062
        %1066 = vset.pattern.permute.xlu0 0
        %1067 = vperm.xlu0 %1066, %v1004
        %v1068 = vpop.permute.xlu0 %1067
        %1071 = vset.pattern.permute.xlu0 0
        %1072 = vperm.xlu0 %1071, %v1005
        %v1073 = vpop.permute.xlu0 %1072
        %1076 = vset.pattern.permute.xlu0 0
        %1077 = vperm.xlu0 %1076, %v1006
        %v1078 = vpop.permute.xlu0 %1077
        %1081 = vset.pattern.permute.xlu0 0
        %1082 = vperm.xlu0 %1081, %v1007
        %v1083 = vpop.permute.xlu0 %1082
        %1086 = vset.pattern.permute.xlu0 0
        %1087 = vperm.xlu0 %1086, %v1008
        %v1088 = vpop.permute.xlu0 %1087
        %v1091 = vlaneseq
        %v1092 = vshrl.u32 %v1091, 7
        %v1093 = vsub.s32 0, %v1092
        %v1094 = vrot.slane %v1009, %v1093
        %v1095 = vlaneseq
        %v1096 = vshrl.u32 %v1095, 7
        %v1097 = vsub.s32 1, %v1096
        %v1098 = vrot.slane %v1009, %v1097
        %v1101 = vadd.f32 %v1013, %v1094
        %v1102 = vadd.f32 %v1013, %v1098
        %v1103 = vadd.f32 %v1018, %v1094
        %v1104 = vadd.f32 %v1018, %v1098
        %v1105 = vadd.f32 %v1023, %v1094
        %v1106 = vadd.f32 %v1023, %v1098
        %v1107 = vadd.f32 %v1028, %v1094
        %v1108 = vadd.f32 %v1028, %v1098
        %v1109 = vadd.f32 %v1033, %v1094
        %v1110 = vadd.f32 %v1033, %v1098
        %v1111 = vadd.f32 %v1038, %v1094
        %v1112 = vadd.f32 %v1038, %v1098
        %v1113 = vadd.f32 %v1043, %v1094
        %v1114 = vadd.f32 %v1043, %v1098
        %v1115 = vadd.f32 %v1048, %v1094
        %v1116 = vadd.f32 %v1048, %v1098
        %v1117 = vadd.f32 %v1053, %v1094
        %v1118 = vadd.f32 %v1053, %v1098
        %v1119 = vadd.f32 %v1058, %v1094
        %v1120 = vadd.f32 %v1058, %v1098
        %v1121 = vadd.f32 %v1063, %v1094
        %v1122 = vadd.f32 %v1063, %v1098
        %v1123 = vadd.f32 %v1068, %v1094
        %v1124 = vadd.f32 %v1068, %v1098
        %v1125 = vadd.f32 %v1073, %v1094
        %v1126 = vadd.f32 %v1073, %v1098
        %v1127 = vadd.f32 %v1078, %v1094
        %v1128 = vadd.f32 %v1078, %v1098
        %v1129 = vadd.f32 %v1083, %v1094
        %v1130 = vadd.f32 %v1083, %v1098
        %v1131 = vadd.f32 %v1088, %v1094
        %v1132 = vadd.f32 %v1088, %v1098
        %vm1133 = vcmp.gt.f32.partialorder %v1101, 0.0
        %vm1134 = vcmp.gt.f32.partialorder %v1102, 0.0
        %vm1135 = vcmp.gt.f32.partialorder %v1103, 0.0
        %vm1136 = vcmp.gt.f32.partialorder %v1104, 0.0
        %vm1137 = vcmp.gt.f32.partialorder %v1105, 0.0
        %vm1138 = vcmp.gt.f32.partialorder %v1106, 0.0
        %vm1139 = vcmp.gt.f32.partialorder %v1107, 0.0
        %vm1140 = vcmp.gt.f32.partialorder %v1108, 0.0
        %vm1141 = vcmp.gt.f32.partialorder %v1109, 0.0
        %vm1142 = vcmp.gt.f32.partialorder %v1110, 0.0
        %vm1143 = vcmp.gt.f32.partialorder %v1111, 0.0
        %vm1144 = vcmp.gt.f32.partialorder %v1112, 0.0
        %vm1145 = vcmp.gt.f32.partialorder %v1113, 0.0
        %vm1146 = vcmp.gt.f32.partialorder %v1114, 0.0
        %vm1147 = vcmp.gt.f32.partialorder %v1115, 0.0
        %vm1148 = vcmp.gt.f32.partialorder %v1116, 0.0
        %vm1149 = vcmp.gt.f32.partialorder %v1117, 0.0
        %vm1150 = vcmp.gt.f32.partialorder %v1118, 0.0
        %vm1151 = vcmp.gt.f32.partialorder %v1119, 0.0
        %vm1152 = vcmp.gt.f32.partialorder %v1120, 0.0
        %vm1153 = vcmp.gt.f32.partialorder %v1121, 0.0
        %vm1154 = vcmp.gt.f32.partialorder %v1122, 0.0
        %vm1155 = vcmp.gt.f32.partialorder %v1123, 0.0
        %vm1156 = vcmp.gt.f32.partialorder %v1124, 0.0
        %vm1157 = vcmp.gt.f32.partialorder %v1125, 0.0
        %vm1158 = vcmp.gt.f32.partialorder %v1126, 0.0
        %vm1159 = vcmp.gt.f32.partialorder %v1127, 0.0
        %vm1160 = vcmp.gt.f32.partialorder %v1128, 0.0
        %vm1161 = vcmp.gt.f32.partialorder %v1129, 0.0
        %vm1162 = vcmp.gt.f32.partialorder %v1130, 0.0
        %vm1163 = vcmp.gt.f32.partialorder %v1131, 0.0
        %vm1164 = vcmp.gt.f32.partialorder %v1132, 0.0
        %v1165 = vmul.f32 %v1101, 0.2
        %v1166 = vmul.f32 %v1102, 0.2
        %v1167 = vmul.f32 %v1103, 0.2
        %v1168 = vmul.f32 %v1104, 0.2
        %v1169 = vmul.f32 %v1105, 0.2
        %v1170 = vmul.f32 %v1106, 0.2
        %v1171 = vmul.f32 %v1107, 0.2
        %v1172 = vmul.f32 %v1108, 0.2
        %v1173 = vmul.f32 %v1109, 0.2
        %v1174 = vmul.f32 %v1110, 0.2
        %v1175 = vmul.f32 %v1111, 0.2
        %v1176 = vmul.f32 %v1112, 0.2
        %v1177 = vmul.f32 %v1113, 0.2
        %v1178 = vmul.f32 %v1114, 0.2
        %v1179 = vmul.f32 %v1115, 0.2
        %v1180 = vmul.f32 %v1116, 0.2
        %v1181 = vmul.f32 %v1117, 0.2
        %v1182 = vmul.f32 %v1118, 0.2
        %v1183 = vmul.f32 %v1119, 0.2
        %v1184 = vmul.f32 %v1120, 0.2
        %v1185 = vmul.f32 %v1121, 0.2
        %v1186 = vmul.f32 %v1122, 0.2
        %v1187 = vmul.f32 %v1123, 0.2
        %v1188 = vmul.f32 %v1124, 0.2
        %v1189 = vmul.f32 %v1125, 0.2
        %v1190 = vmul.f32 %v1126, 0.2
        %v1191 = vmul.f32 %v1127, 0.2
        %v1192 = vmul.f32 %v1128, 0.2
        %v1193 = vmul.f32 %v1129, 0.2
        %v1194 = vmul.f32 %v1130, 0.2
        %v1195 = vmul.f32 %v1131, 0.2
        %v1196 = vmul.f32 %v1132, 0.2
        %v1197 = vsel %vm1133, %v1101, %v1165
        %v1198 = vsel %vm1134, %v1102, %v1166
        %v1199 = vsel %vm1135, %v1103, %v1167
        %v1200 = vsel %vm1136, %v1104, %v1168
        %v1201 = vsel %vm1137, %v1105, %v1169
        %v1202 = vsel %vm1138, %v1106, %v1170
        %v1203 = vsel %vm1139, %v1107, %v1171
        %v1204 = vsel %vm1140, %v1108, %v1172
        %v1205 = vsel %vm1141, %v1109, %v1173
        %v1206 = vsel %vm1142, %v1110, %v1174
        %v1207 = vsel %vm1143, %v1111, %v1175
        %v1208 = vsel %vm1144, %v1112, %v1176
        %v1209 = vsel %vm1145, %v1113, %v1177
        %v1210 = vsel %vm1146, %v1114, %v1178
        %v1211 = vsel %vm1147, %v1115, %v1179
        %v1212 = vsel %vm1148, %v1116, %v1180
        %v1213 = vsel %vm1149, %v1117, %v1181
        %v1214 = vsel %vm1150, %v1118, %v1182
        %v1215 = vsel %vm1151, %v1119, %v1183
        %v1216 = vsel %vm1152, %v1120, %v1184
        %v1217 = vsel %vm1153, %v1121, %v1185
        %v1218 = vsel %vm1154, %v1122, %v1186
        %v1219 = vsel %vm1155, %v1123, %v1187
        %v1220 = vsel %vm1156, %v1124, %v1188
        %v1221 = vsel %vm1157, %v1125, %v1189
        %v1222 = vsel %vm1158, %v1126, %v1190
        %v1223 = vsel %vm1159, %v1127, %v1191
        %v1224 = vsel %vm1160, %v1128, %v1192
        %v1225 = vsel %vm1161, %v1129, %v1193
        %v1226 = vsel %vm1162, %v1130, %v1194
        %v1227 = vsel %vm1163, %v1131, %v1195
        %v1228 = vsel %vm1164, %v1132, %v1196
        %v1229 = vld [vmem:[%s203] sm:$0xff]
        %v1230 = vld [vmem:[%s203 + $0x8] sm:$0xff]
        %v1231 = vld [vmem:[%s203 + $0x10] sm:$0xff]
        %v1232 = vld [vmem:[%s203 + $0x18] sm:$0xff]
        %v1233 = vld [vmem:[%s203 + $0x20] sm:$0xff]
        %v1234 = vld [vmem:[%s203 + $0x28] sm:$0xff]
        %v1235 = vld [vmem:[%s203 + $0x30] sm:$0xff]
        %v1236 = vld [vmem:[%s203 + $0x38] sm:$0xff]
        %v1237 = vunpack.c.0.s8 %v1229
        %v1238 = vunpack.c.0.s8 %v1230
        %v1239 = vunpack.c.1.s8 %v1229
        %v1240 = vunpack.c.1.s8 %v1230
        %v1241 = vunpack.c.2.s8 %v1229
        %v1242 = vunpack.c.2.s8 %v1230
        %v1243 = vunpack.c.3.s8 %v1229
        %v1244 = vunpack.c.3.s8 %v1230
        %v1245 = vunpack.c.0.s8 %v1231
        %v1246 = vunpack.c.0.s8 %v1232
        %v1247 = vunpack.c.1.s8 %v1231
        %v1248 = vunpack.c.1.s8 %v1232
        %v1249 = vunpack.c.2.s8 %v1231
        %v1250 = vunpack.c.2.s8 %v1232
        %v1251 = vunpack.c.3.s8 %v1231
        %v1252 = vunpack.c.3.s8 %v1232
        %v1253 = vunpack.c.0.s8 %v1233
        %v1254 = vunpack.c.0.s8 %v1234
        %v1255 = vunpack.c.1.s8 %v1233
        %v1256 = vunpack.c.1.s8 %v1234
        %v1257 = vunpack.c.2.s8 %v1233
        %v1258 = vunpack.c.2.s8 %v1234
        %v1259 = vunpack.c.3.s8 %v1233
        %v1260 = vunpack.c.3.s8 %v1234
        %v1261 = vunpack.c.0.s8 %v1235
        %v1262 = vunpack.c.0.s8 %v1236
        %v1263 = vunpack.c.1.s8 %v1235
        %v1264 = vunpack.c.1.s8 %v1236
        %v1265 = vunpack.c.2.s8 %v1235
        %v1266 = vunpack.c.2.s8 %v1236
        %v1267 = vunpack.c.3.s8 %v1235
        %v1268 = vunpack.c.3.s8 %v1236
        %v1269 = vcvt.s32.f32 %v1237
        %v1270 = vcvt.s32.f32 %v1238
        %v1271 = vcvt.s32.f32 %v1239
        %v1272 = vcvt.s32.f32 %v1240
        %v1273 = vcvt.s32.f32 %v1241
        %v1274 = vcvt.s32.f32 %v1242
        %v1275 = vcvt.s32.f32 %v1243
        %v1276 = vcvt.s32.f32 %v1244
        %v1277 = vcvt.s32.f32 %v1245
        %v1278 = vcvt.s32.f32 %v1246
        %v1279 = vcvt.s32.f32 %v1247
        %v1280 = vcvt.s32.f32 %v1248
        %v1281 = vcvt.s32.f32 %v1249
        %v1282 = vcvt.s32.f32 %v1250
        %v1283 = vcvt.s32.f32 %v1251
        %v1284 = vcvt.s32.f32 %v1252
        %v1285 = vcvt.s32.f32 %v1253
        %v1286 = vcvt.s32.f32 %v1254
        %v1287 = vcvt.s32.f32 %v1255
        %v1288 = vcvt.s32.f32 %v1256
        %v1289 = vcvt.s32.f32 %v1257
        %v1290 = vcvt.s32.f32 %v1258
        %v1291 = vcvt.s32.f32 %v1259
        %v1292 = vcvt.s32.f32 %v1260
        %v1293 = vcvt.s32.f32 %v1261
        %v1294 = vcvt.s32.f32 %v1262
        %v1295 = vcvt.s32.f32 %v1263
        %v1296 = vcvt.s32.f32 %v1264
        %v1297 = vcvt.s32.f32 %v1265
        %v1298 = vcvt.s32.f32 %v1266
        %v1299 = vcvt.s32.f32 %v1267
        %v1300 = vcvt.s32.f32 %v1268
        %vm1301 = vcmp.gt.f32.partialorder %v1269, 0.0
        %vm1302 = vcmp.gt.f32.partialorder %v1270, 0.0
        %vm1303 = vcmp.gt.f32.partialorder %v1271, 0.0
        %vm1304 = vcmp.gt.f32.partialorder %v1272, 0.0
        %vm1305 = vcmp.gt.f32.partialorder %v1273, 0.0
        %vm1306 = vcmp.gt.f32.partialorder %v1274, 0.0
        %vm1307 = vcmp.gt.f32.partialorder %v1275, 0.0
        %vm1308 = vcmp.gt.f32.partialorder %v1276, 0.0
        %vm1309 = vcmp.gt.f32.partialorder %v1277, 0.0
        %vm1310 = vcmp.gt.f32.partialorder %v1278, 0.0
        %vm1311 = vcmp.gt.f32.partialorder %v1279, 0.0
        %vm1312 = vcmp.gt.f32.partialorder %v1280, 0.0
        %vm1313 = vcmp.gt.f32.partialorder %v1281, 0.0
        %vm1314 = vcmp.gt.f32.partialorder %v1282, 0.0
        %vm1315 = vcmp.gt.f32.partialorder %v1283, 0.0
        %vm1316 = vcmp.gt.f32.partialorder %v1284, 0.0
        %vm1317 = vcmp.gt.f32.partialorder %v1285, 0.0
        %vm1318 = vcmp.gt.f32.partialorder %v1286, 0.0
        %vm1319 = vcmp.gt.f32.partialorder %v1287, 0.0
        %vm1320 = vcmp.gt.f32.partialorder %v1288, 0.0
        %vm1321 = vcmp.gt.f32.partialorder %v1289, 0.0
        %vm1322 = vcmp.gt.f32.partialorder %v1290, 0.0
        %vm1323 = vcmp.gt.f32.partialorder %v1291, 0.0
        %vm1324 = vcmp.gt.f32.partialorder %v1292, 0.0
        %vm1325 = vcmp.gt.f32.partialorder %v1293, 0.0
        %vm1326 = vcmp.gt.f32.partialorder %v1294, 0.0
        %vm1327 = vcmp.gt.f32.partialorder %v1295, 0.0
        %vm1328 = vcmp.gt.f32.partialorder %v1296, 0.0
        %vm1329 = vcmp.gt.f32.partialorder %v1297, 0.0
        %vm1330 = vcmp.gt.f32.partialorder %v1298, 0.0
        %vm1331 = vcmp.gt.f32.partialorder %v1299, 0.0
        %vm1332 = vcmp.gt.f32.partialorder %v1300, 0.0
        %v1333 = vsel %vm1301, %v1197, -9e+15
        %v1334 = vsel %vm1302, %v1198, -9e+15
        %v1335 = vsel %vm1303, %v1199, -9e+15
        %v1336 = vsel %vm1304, %v1200, -9e+15
        %v1337 = vsel %vm1305, %v1201, -9e+15
        %v1338 = vsel %vm1306, %v1202, -9e+15
        %v1339 = vsel %vm1307, %v1203, -9e+15
        %v1340 = vsel %vm1308, %v1204, -9e+15
        %v1341 = vsel %vm1309, %v1205, -9e+15
        %v1342 = vsel %vm1310, %v1206, -9e+15
        %v1343 = vsel %vm1311, %v1207, -9e+15
        %v1344 = vsel %vm1312, %v1208, -9e+15
        %v1345 = vsel %vm1313, %v1209, -9e+15
        %v1346 = vsel %vm1314, %v1210, -9e+15
        %v1347 = vsel %vm1315, %v1211, -9e+15
        %v1348 = vsel %vm1316, %v1212, -9e+15
        %v1349 = vsel %vm1317, %v1213, -9e+15
        %v1350 = vsel %vm1318, %v1214, -9e+15
        %v1351 = vsel %vm1319, %v1215, -9e+15
        %v1352 = vsel %vm1320, %v1216, -9e+15
        %v1353 = vsel %vm1321, %v1217, -9e+15
        %v1354 = vsel %vm1322, %v1218, -9e+15
        %v1355 = vsel %vm1323, %v1219, -9e+15
        %v1356 = vsel %vm1324, %v1220, -9e+15
        %v1357 = vsel %vm1325, %v1221, -9e+15
        %v1358 = vsel %vm1326, %v1222, -9e+15
        %v1359 = vsel %vm1327, %v1223, -9e+15
        %v1360 = vsel %vm1328, %v1224, -9e+15
        %v1361 = vsel %vm1329, %v1225, -9e+15
        %v1362 = vsel %vm1330, %v1226, -9e+15
        %v1363 = vsel %vm1331, %v1227, -9e+15
        %v1364 = vsel %vm1332, %v1228, -9e+15
        %v1365 = vmax.f32 %v1333, %v1334
        %1366 = vmax.xlane.f32.xlu0 %v1365
        %v1367 = vpop.xlane.xlu0 %1366
        %v1368 = vmax.f32 %v1335, %v1336
        %1369 = vmax.xlane.f32.xlu0 %v1368
        %v1370 = vpop.xlane.xlu0 %1369
        %v1371 = vmax.f32 %v1337, %v1338
        %1372 = vmax.xlane.f32.xlu0 %v1371
        %v1373 = vpop.xlane.xlu0 %1372
        %v1374 = vmax.f32 %v1339, %v1340
        %1375 = vmax.xlane.f32.xlu0 %v1374
        %v1376 = vpop.xlane.xlu0 %1375
        %v1377 = vmax.f32 %v1341, %v1342
        %1378 = vmax.xlane.f32.xlu0 %v1377
        %v1379 = vpop.xlane.xlu0 %1378
        %v1380 = vmax.f32 %v1343, %v1344
        %1381 = vmax.xlane.f32.xlu0 %v1380
        %v1382 = vpop.xlane.xlu0 %1381
        %v1383 = vmax.f32 %v1345, %v1346
        %1384 = vmax.xlane.f32.xlu0 %v1383
        %v1385 = vpop.xlane.xlu0 %1384
        %v1386 = vmax.f32 %v1347, %v1348
        %1387 = vmax.xlane.f32.xlu0 %v1386
        %v1388 = vpop.xlane.xlu0 %1387
        %v1389 = vmax.f32 %v1349, %v1350
        %1390 = vmax.xlane.f32.xlu0 %v1389
        %v1391 = vpop.xlane.xlu0 %1390
        %v1392 = vmax.f32 %v1351, %v1352
        %1393 = vmax.xlane.f32.xlu0 %v1392
        %v1394 = vpop.xlane.xlu0 %1393
        %v1395 = vmax.f32 %v1353, %v1354
        %1396 = vmax.xlane.f32.xlu0 %v1395
        %v1397 = vpop.xlane.xlu0 %1396
        %v1398 = vmax.f32 %v1355, %v1356
        %1399 = vmax.xlane.f32.xlu0 %v1398
        %v1400 = vpop.xlane.xlu0 %1399
        %v1401 = vmax.f32 %v1357, %v1358
        %1402 = vmax.xlane.f32.xlu0 %v1401
        %v1403 = vpop.xlane.xlu0 %1402
        %v1404 = vmax.f32 %v1359, %v1360
        %1405 = vmax.xlane.f32.xlu0 %v1404
        %v1406 = vpop.xlane.xlu0 %1405
        %v1407 = vmax.f32 %v1361, %v1362
        %1408 = vmax.xlane.f32.xlu0 %v1407
        %v1409 = vpop.xlane.xlu0 %1408
        %v1410 = vmax.f32 %v1363, %v1364
        %1411 = vmax.xlane.f32.xlu0 %v1410
        %v1412 = vpop.xlane.xlu0 %1411
        %v1413 = vsub.f32 %v1333, %v1367
        %v1414 = vsub.f32 %v1334, %v1367
        %v1415 = vsub.f32 %v1335, %v1370
        %v1416 = vsub.f32 %v1336, %v1370
        %v1417 = vsub.f32 %v1337, %v1373
        %v1418 = vsub.f32 %v1338, %v1373
        %v1419 = vsub.f32 %v1339, %v1376
        %v1420 = vsub.f32 %v1340, %v1376
        %v1421 = vsub.f32 %v1341, %v1379
        %v1422 = vsub.f32 %v1342, %v1379
        %v1423 = vsub.f32 %v1343, %v1382
        %v1424 = vsub.f32 %v1344, %v1382
        %v1425 = vsub.f32 %v1345, %v1385
        %v1426 = vsub.f32 %v1346, %v1385
        %v1427 = vsub.f32 %v1347, %v1388
        %v1428 = vsub.f32 %v1348, %v1388
        %v1429 = vsub.f32 %v1349, %v1391
        %v1430 = vsub.f32 %v1350, %v1391
        %v1431 = vsub.f32 %v1351, %v1394
        %v1432 = vsub.f32 %v1352, %v1394
        %v1433 = vsub.f32 %v1353, %v1397
        %v1434 = vsub.f32 %v1354, %v1397
        %v1435 = vsub.f32 %v1355, %v1400
        %v1436 = vsub.f32 %v1356, %v1400
        %v1437 = vsub.f32 %v1357, %v1403
        %v1438 = vsub.f32 %v1358, %v1403
        %v1439 = vsub.f32 %v1359, %v1406
        %v1440 = vsub.f32 %v1360, %v1406
        %v1441 = vsub.f32 %v1361, %v1409
        %v1442 = vsub.f32 %v1362, %v1409
        %v1443 = vsub.f32 %v1363, %v1412
        %v1444 = vsub.f32 %v1364, %v1412
        %v1445 = vmul.f32 %v1413, 1.442695
        %v1446 = vpow.pop %v1445
        %v1447 = vmul.f32 %v1414, 1.442695
        %v1448 = vpow.pop %v1447
        %v1449 = vmul.f32 %v1415, 1.442695
        %v1450 = vpow.pop %v1449
        %v1451 = vmul.f32 %v1416, 1.442695
        %v1452 = vpow.pop %v1451
        %v1453 = vmul.f32 %v1417, 1.442695
        %v1454 = vpow.pop %v1453
        %v1455 = vmul.f32 %v1418, 1.442695
        %v1456 = vpow.pop %v1455
        %v1457 = vmul.f32 %v1419, 1.442695
        %v1458 = vpow.pop %v1457
        %v1459 = vmul.f32 %v1420, 1.442695
        %v1460 = vpow.pop %v1459
        %v1461 = vmul.f32 %v1421, 1.442695
        %v1462 = vpow.pop %v1461
        %v1463 = vmul.f32 %v1422, 1.442695
        %v1464 = vpow.pop %v1463
        %v1465 = vmul.f32 %v1423, 1.442695
        %v1466 = vpow.pop %v1465
        %v1467 = vmul.f32 %v1424, 1.442695
        %v1468 = vpow.pop %v1467
        %v1469 = vmul.f32 %v1425, 1.442695
        %v1470 = vpow.pop %v1469
        %v1471 = vmul.f32 %v1426, 1.442695
        %v1472 = vpow.pop %v1471
        %v1473 = vmul.f32 %v1427, 1.442695
        %v1474 = vpow.pop %v1473
        %v1475 = vmul.f32 %v1428, 1.442695
        %v1476 = vpow.pop %v1475
        %v1477 = vmul.f32 %v1429, 1.442695
        %v1478 = vpow.pop %v1477
        %v1479 = vmul.f32 %v1430, 1.442695
        %v1480 = vpow.pop %v1479
        %v1481 = vmul.f32 %v1431, 1.442695
        %v1482 = vpow.pop %v1481
        %v1483 = vmul.f32 %v1432, 1.442695
        %v1484 = vpow.pop %v1483
        %v1485 = vmul.f32 %v1433, 1.442695
        %v1486 = vpow.pop %v1485
        %v1487 = vmul.f32 %v1434, 1.442695
        %v1488 = vpow.pop %v1487
        %v1489 = vmul.f32 %v1435, 1.442695
        %v1490 = vpow.pop %v1489
        %v1491 = vmul.f32 %v1436, 1.442695
        %v1492 = vpow.pop %v1491
        %v1493 = vmul.f32 %v1437, 1.442695
        %v1494 = vpow.pop %v1493
        %v1495 = vmul.f32 %v1438, 1.442695
        %v1496 = vpow.pop %v1495
        %v1497 = vmul.f32 %v1439, 1.442695
        %v1498 = vpow.pop %v1497
        %v1499 = vmul.f32 %v1440, 1.442695
        %v1500 = vpow.pop %v1499
        %v1501 = vmul.f32 %v1441, 1.442695
        %v1502 = vpow.pop %v1501
        %v1503 = vmul.f32 %v1442, 1.442695
        %v1504 = vpow.pop %v1503
        %v1505 = vmul.f32 %v1443, 1.442695
        %v1506 = vpow.pop %v1505
        %v1507 = vmul.f32 %v1444, 1.442695
        %v1508 = vpow.pop %v1507
        %v1509 = vadd.f32 %v1446, %v1448
        %1510 = vadd.xlane.f32.xlu0 %v1509
        %v1511 = vpop.xlane.xlu0 %1510
        %v1512 = vadd.f32 %v1450, %v1452
        %1513 = vadd.xlane.f32.xlu0 %v1512
        %v1514 = vpop.xlane.xlu0 %1513
        %v1515 = vadd.f32 %v1454, %v1456
        %1516 = vadd.xlane.f32.xlu0 %v1515
        %v1517 = vpop.xlane.xlu0 %1516
        %v1518 = vadd.f32 %v1458, %v1460
        %1519 = vadd.xlane.f32.xlu0 %v1518
        %v1520 = vpop.xlane.xlu0 %1519
        %v1521 = vadd.f32 %v1462, %v1464
        %1522 = vadd.xlane.f32.xlu0 %v1521
        %v1523 = vpop.xlane.xlu0 %1522
        %v1524 = vadd.f32 %v1466, %v1468
        %1525 = vadd.xlane.f32.xlu0 %v1524
        %v1526 = vpop.xlane.xlu0 %1525
        %v1527 = vadd.f32 %v1470, %v1472
        %1528 = vadd.xlane.f32.xlu0 %v1527
        %v1529 = vpop.xlane.xlu0 %1528
        %v1530 = vadd.f32 %v1474, %v1476
        %1531 = vadd.xlane.f32.xlu0 %v1530
        %v1532 = vpop.xlane.xlu0 %1531
        %v1533 = vadd.f32 %v1478, %v1480
        %1534 = vadd.xlane.f32.xlu0 %v1533
        %v1535 = vpop.xlane.xlu0 %1534
        %v1536 = vadd.f32 %v1482, %v1484
        %1537 = vadd.xlane.f32.xlu0 %v1536
        %v1538 = vpop.xlane.xlu0 %1537
        %v1539 = vadd.f32 %v1486, %v1488
        %1540 = vadd.xlane.f32.xlu0 %v1539
        %v1541 = vpop.xlane.xlu0 %1540
        %v1542 = vadd.f32 %v1490, %v1492
        %1543 = vadd.xlane.f32.xlu0 %v1542
        %v1544 = vpop.xlane.xlu0 %1543
        %v1545 = vadd.f32 %v1494, %v1496
        %1546 = vadd.xlane.f32.xlu0 %v1545
        %v1547 = vpop.xlane.xlu0 %1546
        %v1548 = vadd.f32 %v1498, %v1500
        %1549 = vadd.xlane.f32.xlu0 %v1548
        %v1550 = vpop.xlane.xlu0 %1549
        %v1551 = vadd.f32 %v1502, %v1504
        %1552 = vadd.xlane.f32.xlu0 %v1551
        %v1553 = vpop.xlane.xlu0 %1552
        %v1554 = vadd.f32 %v1506, %v1508
        %1555 = vadd.xlane.f32.xlu0 %v1554
        %v1556 = vpop.xlane.xlu0 %1555
        %v1557 = vrcp.pop %v1511
        %v1558 = vrcp.pop %v1514
        %v1559 = vrcp.pop %v1517
        %v1560 = vrcp.pop %v1520
        %v1561 = vrcp.pop %v1523
        %v1562 = vrcp.pop %v1526
        %v1563 = vrcp.pop %v1529
        %v1564 = vrcp.pop %v1532
        %v1565 = vrcp.pop %v1535
        %v1566 = vrcp.pop %v1538
        %v1567 = vrcp.pop %v1541
        %v1568 = vrcp.pop %v1544
        %v1569 = vrcp.pop %v1547
        %v1570 = vrcp.pop %v1550
        %v1571 = vrcp.pop %v1553
        %v1572 = vrcp.pop %v1556
        %v1573 = vmul.f32 %v1446, %v1557
        %v1574 = vmul.f32 %v1448, %v1557
        %v1575 = vmul.f32 %v1450, %v1558
        %v1576 = vmul.f32 %v1452, %v1558
        %v1577 = vmul.f32 %v1454, %v1559
        %v1578 = vmul.f32 %v1456, %v1559
        %v1579 = vmul.f32 %v1458, %v1560
        %v1580 = vmul.f32 %v1460, %v1560
        %v1581 = vmul.f32 %v1462, %v1561
        %v1582 = vmul.f32 %v1464, %v1561
        %v1583 = vmul.f32 %v1466, %v1562
        %v1584 = vmul.f32 %v1468, %v1562
        %v1585 = vmul.f32 %v1470, %v1563
        %v1586 = vmul.f32 %v1472, %v1563
        %v1587 = vmul.f32 %v1474, %v1564
        %v1588 = vmul.f32 %v1476, %v1564
        %v1589 = vmul.f32 %v1478, %v1565
        %v1590 = vmul.f32 %v1480, %v1565
        %v1591 = vmul.f32 %v1482, %v1566
        %v1592 = vmul.f32 %v1484, %v1566
        %v1593 = vmul.f32 %v1486, %v1567
        %v1594 = vmul.f32 %v1488, %v1567
        %v1595 = vmul.f32 %v1490, %v1568
        %v1596 = vmul.f32 %v1492, %v1568
        %v1597 = vmul.f32 %v1494, %v1569
        %v1598 = vmul.f32 %v1496, %v1569
        %v1599 = vmul.f32 %v1498, %v1570
        %v1600 = vmul.f32 %v1500, %v1570
        %v1601 = vmul.f32 %v1502, %v1571
        %v1602 = vmul.f32 %v1504, %v1571
        %v1603 = vmul.f32 %v1506, %v1572
        %v1604 = vmul.f32 %v1508, %v1572
        %v1605 = vpack.c.bf16 %v1575, %v1573
        %v1606 = vpack.c.bf16 %v1576, %v1574
        %v1607 = vpack.c.bf16 %v1579, %v1577
        %v1608 = vpack.c.bf16 %v1580, %v1578
        %v1609 = vpack.c.bf16 %v1583, %v1581
        %v1610 = vpack.c.bf16 %v1584, %v1582
        %v1611 = vpack.c.bf16 %v1587, %v1585
        %v1612 = vpack.c.bf16 %v1588, %v1586
        %v1613 = vpack.c.bf16 %v1591, %v1589
        %v1614 = vpack.c.bf16 %v1592, %v1590
        %v1615 = vpack.c.bf16 %v1595, %v1593
        %v1616 = vpack.c.bf16 %v1596, %v1594
        %v1617 = vpack.c.bf16 %v1599, %v1597
        %v1618 = vpack.c.bf16 %v1600, %v1598
        %v1619 = vpack.c.bf16 %v1603, %v1601
        %v1620 = vpack.c.bf16 %v1604, %v1602
        %v1621 = vld [vmem:[#allocation2] sm:$0xf]
        %v1622 = vld [vmem:[#allocation2 + $0x4] sm:$0xf]
        %v1623 = vld [vmem:[#allocation2 + $0x8] sm:$0xf]
        %v1624 = vld [vmem:[#allocation2 + $0xc] sm:$0xf]
        %v1625 = vld [vmem:[#allocation2 + $0x10] sm:$0xf]
        %v1626 = vld [vmem:[#allocation2 + $0x14] sm:$0xf]
        %v1627 = vld [vmem:[#allocation2 + $0x18] sm:$0xf]
        %v1628 = vld [vmem:[#allocation2 + $0x1c] sm:$0xf]
        %v1629 = vld [vmem:[#allocation2 + $0x20] sm:$0xf]
        %v1630 = vld [vmem:[#allocation2 + $0x24] sm:$0xf]
        %v1631 = vld [vmem:[#allocation2 + $0x28] sm:$0xf]
        %v1632 = vld [vmem:[#allocation2 + $0x2c] sm:$0xf]
        %v1633 = vld [vmem:[#allocation2 + $0x30] sm:$0xf]
        %v1634 = vld [vmem:[#allocation2 + $0x34] sm:$0xf]
        %v1635 = vld [vmem:[#allocation2 + $0x38] sm:$0xf]
        %v1636 = vld [vmem:[#allocation2 + $0x3c] sm:$0xf]
        %v1637 = vld [vmem:[#allocation2 + $0x40] sm:$0xf]
        %v1638 = vld [vmem:[#allocation2 + $0x44] sm:$0xf]
        %v1639 = vld [vmem:[#allocation2 + $0x48] sm:$0xf]
        %v1640 = vld [vmem:[#allocation2 + $0x4c] sm:$0xf]
        %v1641 = vld [vmem:[#allocation2 + $0x50] sm:$0xf]
        %v1642 = vld [vmem:[#allocation2 + $0x54] sm:$0xf]
        %v1643 = vld [vmem:[#allocation2 + $0x58] sm:$0xf]
        %v1644 = vld [vmem:[#allocation2 + $0x5c] sm:$0xf]
        %v1645 = vld [vmem:[#allocation2 + $0x60] sm:$0xf]
        %v1646 = vld [vmem:[#allocation2 + $0x64] sm:$0xf]
        %v1647 = vld [vmem:[#allocation2 + $0x68] sm:$0xf]
        %v1648 = vld [vmem:[#allocation2 + $0x6c] sm:$0xf]
        %v1649 = vld [vmem:[#allocation2 + $0x70] sm:$0xf]
        %v1650 = vld [vmem:[#allocation2 + $0x74] sm:$0xf]
        %v1651 = vld [vmem:[#allocation2 + $0x78] sm:$0xf]
        %v1652 = vld [vmem:[#allocation2 + $0x7c] sm:$0xf]
        %v1685 = vunpack.c.l.b16 %v1621
        %v1686 = vunpack.c.l.b16 %v1622
        %v1687 = vunpack.c.l.b16 %v1623
        %v1688 = vunpack.c.l.b16 %v1624
        %v1689 = vunpack.c.l.b16 %v1625
        %v1690 = vunpack.c.l.b16 %v1626
        %v1691 = vunpack.c.l.b16 %v1627
        %v1692 = vunpack.c.l.b16 %v1628
        %v1693 = vunpack.c.l.b16 %v1629
        %v1694 = vunpack.c.l.b16 %v1630
        %v1695 = vunpack.c.l.b16 %v1631
        %v1696 = vunpack.c.l.b16 %v1632
        %v1697 = vunpack.c.l.b16 %v1633
        %v1698 = vunpack.c.l.b16 %v1634
        %v1699 = vunpack.c.l.b16 %v1635
        %v1700 = vunpack.c.l.b16 %v1636
        %v1701 = vunpack.c.l.b16 %v1637
        %v1702 = vunpack.c.l.b16 %v1638
        %v1703 = vunpack.c.l.b16 %v1639
        %v1704 = vunpack.c.l.b16 %v1640
        %v1705 = vunpack.c.l.b16 %v1641
        %v1706 = vunpack.c.l.b16 %v1642
        %v1707 = vunpack.c.l.b16 %v1643
        %v1708 = vunpack.c.l.b16 %v1644
        %v1709 = vunpack.c.l.b16 %v1645
        %v1710 = vunpack.c.l.b16 %v1646
        %v1711 = vunpack.c.l.b16 %v1647
        %v1712 = vunpack.c.l.b16 %v1648
        %v1713 = vunpack.c.l.b16 %v1649
        %v1714 = vunpack.c.l.b16 %v1650
        %v1715 = vunpack.c.l.b16 %v1651
        %v1716 = vunpack.c.l.b16 %v1652
        %v1717 = vpack.c.b16 %v1686, %v1685
        %v1718 = vpack.c.b16 %v1688, %v1687
        %v1719 = vpack.c.b16 %v1690, %v1689
        %v1720 = vpack.c.b16 %v1692, %v1691
        %v1721 = vpack.c.b16 %v1694, %v1693
        %v1722 = vpack.c.b16 %v1696, %v1695
        %v1723 = vpack.c.b16 %v1698, %v1697
        %v1724 = vpack.c.b16 %v1700, %v1699
        %v1725 = vpack.c.b16 %v1702, %v1701
        %v1726 = vpack.c.b16 %v1704, %v1703
        %v1727 = vpack.c.b16 %v1706, %v1705
        %v1728 = vpack.c.b16 %v1708, %v1707
        %v1729 = vpack.c.b16 %v1710, %v1709
        %v1730 = vpack.c.b16 %v1712, %v1711
        %v1731 = vpack.c.b16 %v1714, %v1713
        %v1732 = vpack.c.b16 %v1716, %v1715
        %1749 = vmatprep.subr.bf16.mxu0 0
        %1750 = vmatpush1.bf16.msra.mxu0 %v1724
        %1751 = vmatprep.subr.bf16.mxu0 0
        %1752 = vmatpush1.bf16.msra.mxu0 %v1723
        %1753 = vmatprep.subr.bf16.mxu0 0
        %1754 = vmatpush1.bf16.msra.mxu0 %v1722
        %1755 = vmatprep.subr.bf16.mxu0 0
        %1756 = vmatpush1.bf16.msra.mxu0 %v1721
        %1757 = vmatprep.subr.bf16.mxu0 0
        %1758 = vmatpush1.bf16.msra.mxu0 %v1720
        %1759 = vmatprep.subr.bf16.mxu0 0
        %1760 = vmatpush1.bf16.msra.mxu0 %v1719
        %1761 = vmatprep.subr.bf16.mxu0 0
        %1762 = vmatpush1.bf16.msra.mxu0 %v1718
        %1763 = vmatprep.subr.bf16.mxu0 0
        %1764 = vmatpush1.bf16.msra.mxu0 %v1717
        %1765 = vmatprep.subr.bf16.mxu0 0
        %1766 = vmatpush2.bf16.msra.mxu0 %v1732
        %1767 = vmatprep.subr.bf16.mxu0 0
        %1768 = vmatpush2.bf16.msra.mxu0 %v1731
        %1769 = vmatprep.subr.bf16.mxu0 0
        %1770 = vmatpush2.bf16.msra.mxu0 %v1730
        %1771 = vmatprep.subr.bf16.mxu0 0
        %1772 = vmatpush2.bf16.msra.mxu0 %v1729
        %1773 = vmatprep.subr.bf16.mxu0 0
        %1774 = vmatpush2.bf16.msra.mxu0 %v1728
        %1775 = vmatprep.subr.bf16.mxu0 0
        %1776 = vmatpush2.bf16.msra.mxu0 %v1727
        %1777 = vmatprep.subr.bf16.mxu0 0
        %1778 = vmatpush2.bf16.msra.mxu0 %v1726
        %1779 = vmatprep.subr.bf16.mxu0 0
        %1780 = vmatpush2.bf16.msra.mxu0 %v1725
        %1781 = vmatprep.mubr.bf16.mxu0 %v1606
        %1782 = vmatmul.mubr.bf16.gmra.mxu0 %v1605
        %v1783 = vpop.f32.mrf.mxu0
        %v1784 = vadd.f32 0.0, %v1783
        %v1785 = vpop.f32.mrf.mxu0
        %v1786 = vpop.f32.mrf.mxu0
        %v1787 = vadd.f32 0.0, %v1786
        %v1788 = vpop.f32.mrf.mxu0
        %1789 = vmatprep.mubr.bf16.mxu0 %v1608
        %1790 = vmatmul.mubr.bf16.gmra.mxu0 %v1607
        %v1791 = vpop.f32.mrf.mxu0
        %v1792 = vadd.f32 0.0, %v1791
        %v1793 = vpop.f32.mrf.mxu0
        %v1794 = vpop.f32.mrf.mxu0
        %v1795 = vadd.f32 0.0, %v1794
        %v1796 = vpop.f32.mrf.mxu0
        %1797 = vmatprep.mubr.bf16.mxu0 %v1610
        %1798 = vmatmul.mubr.bf16.gmra.mxu0 %v1609
        %v1799 = vpop.f32.mrf.mxu0
        %v1800 = vadd.f32 0.0, %v1799
        %v1801 = vpop.f32.mrf.mxu0
        %v1802 = vpop.f32.mrf.mxu0
        %v1803 = vadd.f32 0.0, %v1802
        %v1804 = vpop.f32.mrf.mxu0
        %1805 = vmatprep.mubr.bf16.mxu0 %v1612
        %1806 = vmatmul.mubr.bf16.gmra.mxu0 %v1611
        %v1807 = vpop.f32.mrf.mxu0
        %v1808 = vadd.f32 0.0, %v1807
        %v1809 = vpop.f32.mrf.mxu0
        %v1810 = vpop.f32.mrf.mxu0
        %v1811 = vadd.f32 0.0, %v1810
        %v1812 = vpop.f32.mrf.mxu0
        %1813 = vmatprep.mubr.bf16.mxu0 %v1614
        %1814 = vmatmul.mubr.bf16.gmra.mxu0 %v1613
        %v1815 = vpop.f32.mrf.mxu0
        %v1816 = vadd.f32 0.0, %v1815
        %v1817 = vpop.f32.mrf.mxu0
        %v1818 = vpop.f32.mrf.mxu0
        %v1819 = vadd.f32 0.0, %v1818
        %v1820 = vpop.f32.mrf.mxu0
        %1821 = vmatprep.mubr.bf16.mxu0 %v1616
        %1822 = vmatmul.mubr.bf16.gmra.mxu0 %v1615
        %v1823 = vpop.f32.mrf.mxu0
        %v1824 = vadd.f32 0.0, %v1823
        %v1825 = vpop.f32.mrf.mxu0
        %v1826 = vpop.f32.mrf.mxu0
        %v1827 = vadd.f32 0.0, %v1826
        %v1828 = vpop.f32.mrf.mxu0
        %1829 = vmatprep.mubr.bf16.mxu0 %v1618
        %1830 = vmatmul.mubr.bf16.gmra.mxu0 %v1617
        %v1831 = vpop.f32.mrf.mxu0
        %v1832 = vadd.f32 0.0, %v1831
        %v1833 = vpop.f32.mrf.mxu0
        %v1834 = vpop.f32.mrf.mxu0
        %v1835 = vadd.f32 0.0, %v1834
        %v1836 = vpop.f32.mrf.mxu0
        %1837 = vmatprep.mubr.bf16.mxu0 %v1620
        %1838 = vmatmul.mubr.bf16.gmra.mxu0 %v1619
        %v1839 = vpop.f32.mrf.mxu0
        %v1840 = vadd.f32 0.0, %v1839
        %v1841 = vpop.f32.mrf.mxu0
        %v1842 = vpop.f32.mrf.mxu0
        %v1843 = vadd.f32 0.0, %v1842
        %v1844 = vpop.f32.mrf.mxu0
        %1845 = vdwg.mxu0
        %vm1846 = vcmp.gt.f32.partialorder %v1784, 0.0
        %vm1847 = vcmp.gt.f32.partialorder %v1787, 0.0
        %vm1848 = vcmp.gt.f32.partialorder %v1792, 0.0
        %vm1849 = vcmp.gt.f32.partialorder %v1795, 0.0
        %vm1850 = vcmp.gt.f32.partialorder %v1800, 0.0
        %vm1851 = vcmp.gt.f32.partialorder %v1803, 0.0
        %vm1852 = vcmp.gt.f32.partialorder %v1808, 0.0
        %vm1853 = vcmp.gt.f32.partialorder %v1811, 0.0
        %vm1854 = vcmp.gt.f32.partialorder %v1816, 0.0
        %vm1855 = vcmp.gt.f32.partialorder %v1819, 0.0
        %vm1856 = vcmp.gt.f32.partialorder %v1824, 0.0
        %vm1857 = vcmp.gt.f32.partialorder %v1827, 0.0
        %vm1858 = vcmp.gt.f32.partialorder %v1832, 0.0
        %vm1859 = vcmp.gt.f32.partialorder %v1835, 0.0
        %vm1860 = vcmp.gt.f32.partialorder %v1840, 0.0
        %vm1861 = vcmp.gt.f32.partialorder %v1843, 0.0
        %v1862 = vmul.f32 %v1784, 1.442695
        %v1863 = vpow.pop %v1862
        %v1864 = vmul.f32 %v1787, 1.442695
        %v1865 = vpow.pop %v1864
        %v1866 = vmul.f32 %v1792, 1.442695
        %v1867 = vpow.pop %v1866
        %v1868 = vmul.f32 %v1795, 1.442695
        %v1869 = vpow.pop %v1868
        %v1870 = vmul.f32 %v1800, 1.442695
        %v1871 = vpow.pop %v1870
        %v1872 = vmul.f32 %v1803, 1.442695
        %v1873 = vpow.pop %v1872
        %v1874 = vmul.f32 %v1808, 1.442695
        %v1875 = vpow.pop %v1874
        %v1876 = vmul.f32 %v1811, 1.442695
        %v1877 = vpow.pop %v1876
        %v1878 = vmul.f32 %v1816, 1.442695
        %v1879 = vpow.pop %v1878
        %v1880 = vmul.f32 %v1819, 1.442695
        %v1881 = vpow.pop %v1880
        %v1882 = vmul.f32 %v1824, 1.442695
        %v1883 = vpow.pop %v1882
        %v1884 = vmul.f32 %v1827, 1.442695
        %v1885 = vpow.pop %v1884
        %v1886 = vmul.f32 %v1832, 1.442695
        %v1887 = vpow.pop %v1886
        %v1888 = vmul.f32 %v1835, 1.442695
        %v1889 = vpow.pop %v1888
        %v1890 = vmul.f32 %v1840, 1.442695
        %v1891 = vpow.pop %v1890
        %v1892 = vmul.f32 %v1843, 1.442695
        %v1893 = vpow.pop %v1892
        %v1894 = vsub.f32 %v1863, 1.0
        %v1895 = vsub.f32 %v1865, 1.0
        %v1896 = vsub.f32 %v1867, 1.0
        %v1897 = vsub.f32 %v1869, 1.0
        %v1898 = vsub.f32 %v1871, 1.0
        %v1899 = vsub.f32 %v1873, 1.0
        %v1900 = vsub.f32 %v1875, 1.0
        %v1901 = vsub.f32 %v1877, 1.0
        %v1902 = vsub.f32 %v1879, 1.0
        %v1903 = vsub.f32 %v1881, 1.0
        %v1904 = vsub.f32 %v1883, 1.0
        %v1905 = vsub.f32 %v1885, 1.0
        %v1906 = vsub.f32 %v1887, 1.0
        %v1907 = vsub.f32 %v1889, 1.0
        %v1908 = vsub.f32 %v1891, 1.0
        %v1909 = vsub.f32 %v1893, 1.0
        %v1910 = vsel %vm1846, %v1784, %v1894
        %v1911 = vsel %vm1847, %v1787, %v1895
        %v1912 = vsel %vm1848, %v1792, %v1896
        %v1913 = vsel %vm1849, %v1795, %v1897
        %v1914 = vsel %vm1850, %v1800, %v1898
        %v1915 = vsel %vm1851, %v1803, %v1899
        %v1916 = vsel %vm1852, %v1808, %v1900
        %v1917 = vsel %vm1853, %v1811, %v1901
        %v1918 = vsel %vm1854, %v1816, %v1902
        %v1919 = vsel %vm1855, %v1819, %v1903
        %v1920 = vsel %vm1856, %v1824, %v1904
        %v1921 = vsel %vm1857, %v1827, %v1905
        %v1922 = vsel %vm1858, %v1832, %v1906
        %v1923 = vsel %vm1859, %v1835, %v1907
        %v1924 = vsel %vm1860, %v1840, %v1908
        %v1925 = vsel %vm1861, %v1843, %v1909
        %1926 = vst [vmem:[%s231] sm:$0xff] %v1910
        %1927 = vst [vmem:[%s231 + $0x8] sm:$0xff] %v1911
        %1928 = vst [vmem:[%s231 + $0x10] sm:$0xff] %v1912
        %1929 = vst [vmem:[%s231 + $0x18] sm:$0xff] %v1913
        %1930 = vst [vmem:[%s231 + $0x20] sm:$0xff] %v1914
        %1931 = vst [vmem:[%s231 + $0x28] sm:$0xff] %v1915
        %1932 = vst [vmem:[%s231 + $0x30] sm:$0xff] %v1916
        %1933 = vst [vmem:[%s231 + $0x38] sm:$0xff] %v1917
        %1934 = vst [vmem:[%s231 + $0x40] sm:$0xff] %v1918
        %1935 = vst [vmem:[%s231 + $0x48] sm:$0xff] %v1919
        %1936 = vst [vmem:[%s231 + $0x50] sm:$0xff] %v1920
        %1937 = vst [vmem:[%s231 + $0x58] sm:$0xff] %v1921
        %1938 = vst [vmem:[%s231 + $0x60] sm:$0xff] %v1922
        %1939 = vst [vmem:[%s231 + $0x68] sm:$0xff] %v1923
        %1940 = vst [vmem:[%s231 + $0x70] sm:$0xff] %v1924
        %1941 = vst [vmem:[%s231 + $0x78] sm:$0xff] %v1925
        %s1942 = sand.u32 %s119, 1
        %s1943 = scalar_lea.sflag [#allocation7], %s1942
        %s1944 = sand.u32 %s119, 1
        %s1945 = smul.addr %s1944, 128
        %s1946 = scalar_lea.vmem [#allocation10], %s1945
        // Predicated region
        $region49: #{tpu_custom_call.1} parent=35 // pred_check
          %p1947 = pneg %p129
        $region50: #{tpu_custom_call.1} parent=35 // pred_check_branch
          %1949 = sbr.rel (%p1947) target = $region52
        $region51: #{tpu_custom_call.1} parent=35 // pred_region
          %s1950 = smul.u32 16, %s22
          %s1952 = ssub.s32 2048, 2048
          %1953 = vsyncadd %s1943, %s1952
          %s1954 = smul.addr %s1950, 128
          %s1955 = scalar_lea.hbm %s4, %s1954
          %s1956 = sshll.u32 %s1946, 4
          %s1957 = int_to_ptr.vmem [resolvable:$true] %s1956
          %1962 = dma.vmem_to_hbm [thread:$0]  %s1957, 2048, %s1955, %s1943, 128, 128, 8
        $region52: #{tpu_custom_call.1} parent=35 // pred_fallthru
          _
      $region36: #{tpu_custom_call.1} parent=5 // pred_fallthru
        _
      %p1963 = scmp.le.s32.totalorder 2, %s17
      // Predicated region
      $region53: #{tpu_custom_call.1} parent=5 // pred_check
        %p1964 = pneg %p1963
      $region54: #{tpu_custom_call.1} parent=5 // pred_check_branch
        %1966 = sbr.rel (%p1964) target = $region56
      $region55: #{tpu_custom_call.1} parent=5 // pred_region
        %s1967 = ssub.s32 %s17, 2
        // Predicated region
        $region57: #{tpu_custom_call.1} parent=55 // pred_check
          %p1968 = pneg %p135
        $region58: #{tpu_custom_call.1} parent=55 // pred_check_branch
          %1970 = sbr.rel (%p1968) target = $region60
        $region59: #{tpu_custom_call.1} parent=55 // pred_region
          %s1971 = sand.u32 %s120, 1
          %s1972 = scalar_lea.sflag [#allocation7], %s1971
          %s1973 = sand.u32 %s120, 1
          %s1974 = smul.addr %s1973, 128
          %s1975 = scalar_lea.vmem [#allocation10], %s1974
          %1976 = dma.done %s1972, 2048
        $region60: #{tpu_custom_call.1} parent=55 // pred_fallthru
          _
      $region56: #{tpu_custom_call.1} parent=5 // pred_fallthru
        _
    $region6: #{tpu_custom_call.1} parent=1 // loop_footer
      %s21 = sadd.s32 1, %s17
    $region7: #{tpu_custom_call.1} parent=1 // loop_footer_branch
      %16 = sbr.rel target = $region3
    $region8: #{tpu_custom_call.1} parent=1 // loop_exit
      _
    %1977 = vsyncpa [#allocation6], 1
    %s1978 = scalar_lea.sflag [#allocation6], 1
    %1979 = vsyncpa %s1978, 1
    %1980 = vsyncpa [#allocation9], 1
    %1981 = vsyncpa [#allocation7], 1
    %s1982 = scalar_lea.sflag [#allocation7], 1
    %1983 = vsyncpa %s1982, 1

</llo_original>
